<compile_context>
chip_gen: v7x
topology: tpu7x:2x2x1
jax: 0.10.0
libtpu: 0.0.40
codegen_flags: <defaults>
</compile_context>

<pallas_src>
import functools
import math

import jax
import jax.numpy as jnp
from jax.experimental import pallas as pl
from jax.experimental.pallas import tpu as pltpu


def _loss_sums_kernel(x_ref, t_ref, out_ref,
                      cs_sig, cs_t, cs_bce, cs_sq, inter1, inter2,
                      *, hw, r_tile, num_r):
    """Accumulate loss statistics for one (batch-tile, row-tile) grid step.

    Output lanes (replicated across the 8 sublanes of the (1,8,128) block):
      0: sum(bce_el)   1: sum((x-t)^2)  2: sum(sigmoid(x))  3: sum(t)
      4: sum_b dice_1(b)                5: sum_b dice_2(b)
    """
    r = pl.program_id(1)

    @pl.when(r == 0)
    def _init():
        cs_sig[...] = jnp.zeros_like(cs_sig)
        cs_t[...] = jnp.zeros_like(cs_t)
        cs_bce[...] = jnp.zeros_like(cs_bce)
        cs_sq[...] = jnp.zeros_like(cs_sq)
        inter1[...] = jnp.zeros_like(inter1)
        inter2[...] = jnp.zeros_like(inter2)

    x = x_ref[...].astype(jnp.float32)   # (B, C, Rt, 128)
    t = t_ref[...].astype(jnp.float32)

    # Shared transcendental chain:
    #   e = exp(-|x|);  sigmoid(x) = 1/(1+e) if x>=0 else e/(1+e)
    #   bce_el = max(x,0) - x*t + log(1+e)      (PyTorch BCE-with-logits form)
    e = jnp.exp(-jnp.abs(x))
    inv = 1.0 / (1.0 + e)
    sig = jnp.where(x >= 0.0, inv, e * inv)
    bce_el = jnp.maximum(x, 0.0) - x * t + jnp.log(1.0 + e)
    sq_el = (x - t) * (x - t)

    if hw % 128 != 0:
        # Zero-padded tail of the flattened spatial axis: x == t == 0 there,
        # so only sigmoid (=0.5) and bce (=log 2) need masking.
        row = jax.lax.broadcasted_iota(jnp.int32, x.shape, 2)
        lane = jax.lax.broadcasted_iota(jnp.int32, x.shape, 3)
        flat = (r * r_tile + row) * 128 + lane
        valid = flat < hw
        sig = jnp.where(valid, sig, 0.0)
        bce_el = jnp.where(valid, bce_el, 0.0)

    def red(a):  # (..., Rt, 128) -> (..., 1, 1)  lane reduce then sublane reduce
        return a.sum(axis=-1, keepdims=True).sum(axis=-2, keepdims=True)

    # Per-(sample, channel) partial sums, reused for all statistics.
    cs_sig[...] += red(sig)
    cs_t[...] += red(t)
    cs_bce[...] += red(bce_el)
    cs_sq[...] += red(sq_el)
    inter1[...] += red(sig[:, 1:2] * t[:, 1:2])
    inter2[...] += red(sig[:, 2:3] * t[:, 2:3])

    @pl.when(r == num_r - 1)
    def _finalize():
        smooth = 1e-05
        cs = cs_sig[...]   # (B, C, 1, 1)
        ct = cs_t[...]

        i1 = inter1[...][:, 0]   # (B, 1, 1)
        i2 = inter2[...][:, 0]
        d1 = (2.0 * i1 + smooth) / (cs[:, 1] + ct[:, 1] + smooth)   # (B, 1, 1)
        d2 = (2.0 * i2 + smooth) / (cs[:, 2] + ct[:, 2] + smooth)

        def red_bc(a):  # (B, C, 1, 1) -> (1, 1)
            return a.sum(axis=0).sum(axis=0)

        bce_tot = red_bc(cs_bce[...])
        sq_tot = red_bc(cs_sq[...])
        sig_tot = red_bc(cs)
        t_tot = red_bc(ct)
        d1_tot = d1.sum(axis=0)   # (1, 1)
        d2_tot = d2.sum(axis=0)

        lane = jax.lax.broadcasted_iota(jnp.int32, out_ref.shape, 2)

        def put(k, v):  # place (1,1) scalar v into lane k (all sublanes)
            return jnp.where(lane == k, 1.0, 0.0) * v

        out_ref[...] = (put(0, bce_tot) + put(1, sq_tot) + put(2, sig_tot)
                        + put(3, t_tot) + put(4, d1_tot) + put(5, d2_tot))


def ldc_bce_dice_loss_lits2017(input_nchw, target_nchw, lmbda):
    """JAX/Pallas equivalent of LDC_BCEDiceLoss_lits2017.forward."""
    N, C, H, W = input_nchw.shape
    assert C >= 3, "dice terms use channels 1 and 2"
    HW = H * W
    R = -(-HW // 128)          # 128-lane rows per channel
    pad = R * 128 - HW

    # Keep native dtype on the HBM->VMEM path; cast to f32 inside the kernel.
    x = input_nchw.reshape(N, C, HW)
    t = target_nchw.reshape(N, C, HW)
    if pad:
        x = jnp.pad(x, ((0, 0), (0, 0), (0, pad)))
        t = jnp.pad(t, ((0, 0), (0, 0), (0, pad)))
    x = x.reshape(N, C, R, 128)
    t = t.reshape(N, C, R, 128)

    # ---- tile selection (<= ~2 MiB per input per pipeline buffer) ----------
    itemsize = max(x.dtype.itemsize, t.dtype.itemsize)
    max_block_bytes = 2 * 1024 * 1024
    row_bytes = C * 128 * itemsize            # one sublane-row across channels

    if R * row_bytes <= max_block_bytes:
        r_tile = R
    else:
        cap = max(8, max_block_bytes // row_bytes)
        r_tile = R                             # legal fallback: full extent
        for d in range(8, int(cap) + 1, 8):    # largest mult-of-8 divisor <= cap
            if R % d == 0:
                r_tile = d

    if r_tile == R:
        # Small samples: batch several per grid step to amortize step overhead.
        cap_b = max(1, min(32, max_block_bytes // (R * row_bytes)))
        b_tile = 1
        for d in range(1, min(N, int(cap_b)) + 1):
            if N % d == 0:
                b_tile = d
    else:
        b_tile = 1

    nb = N // b_tile
    nr = R // r_tile

    kernel = functools.partial(_loss_sums_kernel, hw=HW, r_tile=r_tile, num_r=nr)

    sums = pl.pallas_call(
        kernel,
        out_shape=jax.ShapeDtypeStruct((nb, 8, 128), jnp.float32),
        grid_spec=pltpu.PrefetchScalarGridSpec(
            num_scalar_prefetch=0,
            grid=(nb, nr),
            in_specs=[
                pl.BlockSpec((b_tile, C, r_tile, 128), lambda b, r: (b, 0, r, 0)),
                pl.BlockSpec((b_tile, C, r_tile, 128), lambda b, r: (b, 0, r, 0)),
            ],
            out_specs=pl.BlockSpec((1, 8, 128), lambda b, r: (b, 0, 0)),
            scratch_shapes=[
                pltpu.VMEM((b_tile, C, 1, 1), jnp.float32),  # per-(b,c) sigmoid sums
                pltpu.VMEM((b_tile, C, 1, 1), jnp.float32),  # per-(b,c) target sums
                pltpu.VMEM((b_tile, C, 1, 1), jnp.float32),  # per-(b,c) bce sums
                pltpu.VMEM((b_tile, C, 1, 1), jnp.float32),  # per-(b,c) sq-err sums
                pltpu.VMEM((b_tile, 1, 1, 1), jnp.float32),  # per-b intersection ch1
                pltpu.VMEM((b_tile, 1, 1, 1), jnp.float32),  # per-b intersection ch2
            ]),
        compiler_params=pltpu.CompilerParams(
            dimension_semantics=("parallel", "arbitrary")),
    )(x, t)

    vec = jnp.sum(sums, axis=0)[0]   # (128,) — lanes 0..5 hold the statistics
    total = float(N * C * HW)

    bce = vec[0] / total
    mse = vec[1] / total
    constraint = (vec[2] - vec[3]) / total
    dice_1 = 1.0 - vec[4] / N
    dice_2 = 1.0 - vec[5] / N

    alpha, beta, gamma = 0.3, 0.5, 0.2
    l2_reg = 0.9989
    w = l2_reg * math.pi * 0.1
    mean_dice = dice_1 * w + dice_2 * (1.0 - w)

    ldc_loss = alpha * bce + beta * mean_dice + lmbda * constraint
    consistency_loss = ldc_loss + gamma * mse
    return consistency_loss, jax.lax.stop_gradient(constraint)


def _reference(input_nchw, target_nchw, lmbda):
    """Pure-JAX reference mirroring the PyTorch module exactly."""
    x = input_nchw.astype(jnp.float32)
    t = target_nchw.astype(jnp.float32)
    alpha, beta, gamma = 0.3, 0.5, 0.2
    smooth = 1e-05
    l2_reg = 0.9989
    bce = jnp.mean(jnp.maximum(x, 0.0) - x * t + jnp.log1p(jnp.exp(-jnp.abs(x))))
    mse = jnp.mean((x - t) ** 2)
    sig = jax.nn.sigmoid(x)
    num = x.shape[0]
    i1 = sig[:, 1, :, :].reshape(num, -1)
    i2 = sig[:, 2, :, :].reshape(num, -1)
    t1 = t[:, 1, :, :].reshape(num, -1)
    t2 = t[:, 2, :, :].reshape(num, -1)
    d1 = (2.0 * (i1 * t1).sum(1) + smooth) / (i1.sum(1) + t1.sum(1) + smooth)
    d2 = (2.0 * (i2 * t2).sum(1) + smooth) / (i2.sum(1) + t2.sum(1) + smooth)
    d1 = 1.0 - d1.sum() / num
    d2 = 1.0 - d2.sum() / num
    mean_dice = d1 * l2_reg * math.pi * 0.1 + d2 * (1.0 - l2_reg * math.pi * 0.1)
    constraint = jnp.mean(sig) - jnp.mean(t)
    loss = alpha * bce + beta * mean_dice + lmbda * constraint
    return loss + gamma * mse, constraint


if __name__ == "__main__":
    key = jax.random.PRNGKey(0)
    k1, k2 = jax.random.split(key)
    N, C, H, W = 2, 4, 16, 16
    input_logits = jax.random.normal(k1, (N, C, H, W), dtype=jnp.float32)
    target = (jax.random.uniform(k2, (N, C, H, W)) > 0.5).astype(jnp.float32)
    lmbda = 0.7

    loss, constraint = ldc_bce_dice_loss_lits2017(input_logits, target, lmbda)
    loss = jax.block_until_ready(loss)
    constraint = jax.block_until_ready(constraint)

    ref_loss, ref_constraint = _reference(input_logits, target, lmbda)
    assert jnp.allclose(loss, ref_loss, rtol=1e-5, atol=1e-5), (loss, ref_loss)
    assert jnp.allclose(constraint, ref_constraint, rtol=1e-5, atol=1e-5), (
        constraint, ref_constraint)

    print("KERNEL_OK")
</pallas_src>

<mosaic_0001>
module attributes {stable_mosaic.version = 11 : i64} {
  func.func @_loss_sums_kernel(%arg0: i32, %arg1: i32, %arg2: memref<2x4x2x128xf32, #tpu.memory_space<vmem>>, %arg3: memref<2x4x2x128xf32, #tpu.memory_space<vmem>>, %arg4: memref<1x8x128xf32, #tpu.memory_space<vmem>>, %arg5: memref<2x4x1x1xf32, #tpu.memory_space<vmem>>, %arg6: memref<2x4x1x1xf32, #tpu.memory_space<vmem>>, %arg7: memref<2x4x1x1xf32, #tpu.memory_space<vmem>>, %arg8: memref<2x4x1x1xf32, #tpu.memory_space<vmem>>, %arg9: memref<2x1x1x1xf32, #tpu.memory_space<vmem>>, %arg10: memref<2x1x1x1xf32, #tpu.memory_space<vmem>>) attributes {dimension_semantics = [#tpu.dimension_semantics<parallel>, #tpu.dimension_semantics<arbitrary>], iteration_bounds = array<i64: 1, 1>, scalar_prefetch = 0 : i64, scratch_operands = 6 : i64, tpu.core_type = #tpu.core_type<tc>, window_params = [{transform_indices = @transform_0, window_bounds = array<i64: 2, 4, 2, 128>}, {transform_indices = @transform_1, window_bounds = array<i64: 2, 4, 2, 128>}, {transform_indices = @transform_2, window_bounds = array<i64: 1, 8, 128>}]} {
    %c0_i32 = arith.constant 0 : i32
    %0 = arith.cmpi eq, %arg1, %c0_i32 : i32
    %1 = arith.extui %0 : i1 to i32
    %c0_i32_0 = arith.constant 0 : i32
    %2 = arith.cmpi ne, %1, %c0_i32_0 : i32
    scf.if %2 {
      %cst_75 = arith.constant 0.000000e+00 : f32
      %79 = vector.broadcast %cst_75 : f32 to vector<2x4x1x1xf32>
      %c0_76 = arith.constant 0 : index
      %c0_77 = arith.constant 0 : index
      %c0_78 = arith.constant 0 : index
      %c0_79 = arith.constant 0 : index
      %80 = vector.load %arg5[%c0_76, %c0_77, %c0_78, %c0_79] : memref<2x4x1x1xf32, #tpu.memory_space<vmem>>, vector<2x4x1x1xf32>
      tpu.vector_store %arg5[%c0_76, %c0_77, %c0_78, %c0_79], %79 {strides = array<i32>} : memref<2x4x1x1xf32, #tpu.memory_space<vmem>>, vector<2x4x1x1xf32>,
      %cst_80 = arith.constant 0.000000e+00 : f32
      %81 = vector.broadcast %cst_80 : f32 to vector<2x4x1x1xf32>
      %c0_81 = arith.constant 0 : index
      %c0_82 = arith.constant 0 : index
      %c0_83 = arith.constant 0 : index
      %c0_84 = arith.constant 0 : index
      %82 = vector.load %arg6[%c0_81, %c0_82, %c0_83, %c0_84] : memref<2x4x1x1xf32, #tpu.memory_space<vmem>>, vector<2x4x1x1xf32>
      tpu.vector_store %arg6[%c0_81, %c0_82, %c0_83, %c0_84], %81 {strides = array<i32>} : memref<2x4x1x1xf32, #tpu.memory_space<vmem>>, vector<2x4x1x1xf32>,
      %cst_85 = arith.constant 0.000000e+00 : f32
      %83 = vector.broadcast %cst_85 : f32 to vector<2x4x1x1xf32>
      %c0_86 = arith.constant 0 : index
      %c0_87 = arith.constant 0 : index
      %c0_88 = arith.constant 0 : index
      %c0_89 = arith.constant 0 : index
      %84 = vector.load %arg7[%c0_86, %c0_87, %c0_88, %c0_89] : memref<2x4x1x1xf32, #tpu.memory_space<vmem>>, vector<2x4x1x1xf32>
      tpu.vector_store %arg7[%c0_86, %c0_87, %c0_88, %c0_89], %83 {strides = array<i32>} : memref<2x4x1x1xf32, #tpu.memory_space<vmem>>, vector<2x4x1x1xf32>,
      %cst_90 = arith.constant 0.000000e+00 : f32
      %85 = vector.broadcast %cst_90 : f32 to vector<2x4x1x1xf32>
      %c0_91 = arith.constant 0 : index
      %c0_92 = arith.constant 0 : index
      %c0_93 = arith.constant 0 : index
      %c0_94 = arith.constant 0 : index
      %86 = vector.load %arg8[%c0_91, %c0_92, %c0_93, %c0_94] : memref<2x4x1x1xf32, #tpu.memory_space<vmem>>, vector<2x4x1x1xf32>
      tpu.vector_store %arg8[%c0_91, %c0_92, %c0_93, %c0_94], %85 {strides = array<i32>} : memref<2x4x1x1xf32, #tpu.memory_space<vmem>>, vector<2x4x1x1xf32>,
      %cst_95 = arith.constant 0.000000e+00 : f32
      %87 = vector.broadcast %cst_95 : f32 to vector<2x1x1x1xf32>
      %c0_96 = arith.constant 0 : index
      %c0_97 = arith.constant 0 : index
      %c0_98 = arith.constant 0 : index
      %c0_99 = arith.constant 0 : index
      %88 = vector.load %arg9[%c0_96, %c0_97, %c0_98, %c0_99] : memref<2x1x1x1xf32, #tpu.memory_space<vmem>>, vector<2x1x1x1xf32>
      tpu.vector_store %arg9[%c0_96, %c0_97, %c0_98, %c0_99], %87 {strides = array<i32>} : memref<2x1x1x1xf32, #tpu.memory_space<vmem>>, vector<2x1x1x1xf32>,
      %cst_100 = arith.constant 0.000000e+00 : f32
      %89 = vector.broadcast %cst_100 : f32 to vector<2x1x1x1xf32>
      %c0_101 = arith.constant 0 : index
      %c0_102 = arith.constant 0 : index
      %c0_103 = arith.constant 0 : index
      %c0_104 = arith.constant 0 : index
      %90 = vector.load %arg10[%c0_101, %c0_102, %c0_103, %c0_104] : memref<2x1x1x1xf32, #tpu.memory_space<vmem>>, vector<2x1x1x1xf32>
      tpu.vector_store %arg10[%c0_101, %c0_102, %c0_103, %c0_104], %89 {strides = array<i32>} : memref<2x1x1x1xf32, #tpu.memory_space<vmem>>, vector<2x1x1x1xf32>,
    } else {
    }
    %c0 = arith.constant 0 : index
    %c0_1 = arith.constant 0 : index
    %c0_2 = arith.constant 0 : index
    %c0_3 = arith.constant 0 : index
    %3 = vector.load %arg2[%c0, %c0_1, %c0_2, %c0_3] : memref<2x4x2x128xf32, #tpu.memory_space<vmem>>, vector<2x4x2x128xf32>
    %c0_4 = arith.constant 0 : index
    %c0_5 = arith.constant 0 : index
    %c0_6 = arith.constant 0 : index
    %c0_7 = arith.constant 0 : index
    %4 = vector.load %arg3[%c0_4, %c0_5, %c0_6, %c0_7] : memref<2x4x2x128xf32, #tpu.memory_space<vmem>>, vector<2x4x2x128xf32>
    %5 = math.absf %3 : vector<2x4x2x128xf32>
    %cst = arith.constant 0.000000e+00 : f32
    %6 = vector.broadcast %cst : f32 to vector<2x4x2x128xf32>
    %7 = arith.subf %6, %5 : vector<2x4x2x128xf32>
    %8 = math.exp %7 : vector<2x4x2x128xf32>
    %cst_8 = arith.constant 1.000000e+00 : f32
    %9 = vector.broadcast %cst_8 : f32 to vector<2x4x2x128xf32>
    %10 = arith.addf %9, %8 : vector<2x4x2x128xf32>
    %cst_9 = arith.constant 1.000000e+00 : f32
    %11 = vector.broadcast %cst_9 : f32 to vector<2x4x2x128xf32>
    %12 = arith.divf %11, %10 : vector<2x4x2x128xf32>
    %cst_10 = arith.constant 0.000000e+00 : f32
    %13 = vector.broadcast %cst_10 : f32 to vector<2x4x2x128xf32>
    %14 = arith.cmpf oge, %3, %13 : vector<2x4x2x128xf32>
    %15 = arith.mulf %8, %12 : vector<2x4x2x128xf32>
    %16 = arith.select %14, %12, %15 : vector<2x4x2x128xi1>, vector<2x4x2x128xf32>
    %cst_11 = arith.constant 0.000000e+00 : f32
    %17 = vector.broadcast %cst_11 : f32 to vector<2x4x2x128xf32>
    %18 = arith.maximumf %3, %17 : vector<2x4x2x128xf32>
    %19 = arith.mulf %3, %4 : vector<2x4x2x128xf32>
    %20 = arith.subf %18, %19 : vector<2x4x2x128xf32>
    %cst_12 = arith.constant 1.000000e+00 : f32
    %21 = vector.broadcast %cst_12 : f32 to vector<2x4x2x128xf32>
    %22 = arith.addf %21, %8 : vector<2x4x2x128xf32>
    %23 = math.log %22 : vector<2x4x2x128xf32>
    %24 = arith.addf %20, %23 : vector<2x4x2x128xf32>
    %25 = arith.subf %3, %4 : vector<2x4x2x128xf32>
    %26 = arith.subf %3, %4 : vector<2x4x2x128xf32>
    %27 = arith.mulf %25, %26 : vector<2x4x2x128xf32>
    %c0_13 = arith.constant 0 : index
    %c0_14 = arith.constant 0 : index
    %c0_15 = arith.constant 0 : index
    %c0_16 = arith.constant 0 : index
    %28 = vector.load %arg5[%c0_13, %c0_14, %c0_15, %c0_16] : memref<2x4x1x1xf32, #tpu.memory_space<vmem>>, vector<2x4x1x1xf32>
    %cst_17 = arith.constant dense<0.000000e+00> : vector<2x4x2xf32>
    %29 = vector.multi_reduction <add>, %16, %cst_17 [3] : vector<2x4x2x128xf32> to vector<2x4x2xf32>
    %30 = vector.shape_cast %29 : vector<2x4x2xf32> to vector<2x4x2x1xf32>
    %cst_18 = arith.constant dense<0.000000e+00> : vector<2x4x1xf32>
    %31 = vector.multi_reduction <add>, %30, %cst_18 [2] : vector<2x4x2x1xf32> to vector<2x4x1xf32>
    %32 = vector.shape_cast %31 : vector<2x4x1xf32> to vector<2x4x1x1xf32>
    %33 = arith.addf %28, %32 : vector<2x4x1x1xf32>
    %c0_19 = arith.constant 0 : index
    %c0_20 = arith.constant 0 : index
    %c0_21 = arith.constant 0 : index
    %c0_22 = arith.constant 0 : index
    %34 = vector.load %arg5[%c0_19, %c0_20, %c0_21, %c0_22] : memref<2x4x1x1xf32, #tpu.memory_space<vmem>>, vector<2x4x1x1xf32>
    tpu.vector_store %arg5[%c0_19, %c0_20, %c0_21, %c0_22], %33 {strides = array<i32>} : memref<2x4x1x1xf32, #tpu.memory_space<vmem>>, vector<2x4x1x1xf32>,
    %c0_23 = arith.constant 0 : index
    %c0_24 = arith.constant 0 : index
    %c0_25 = arith.constant 0 : index
    %c0_26 = arith.constant 0 : index
    %35 = vector.load %arg6[%c0_23, %c0_24, %c0_25, %c0_26] : memref<2x4x1x1xf32, #tpu.memory_space<vmem>>, vector<2x4x1x1xf32>
    %cst_27 = arith.constant dense<0.000000e+00> : vector<2x4x2xf32>
    %36 = vector.multi_reduction <add>, %4, %cst_27 [3] : vector<2x4x2x128xf32> to vector<2x4x2xf32>
    %37 = vector.shape_cast %36 : vector<2x4x2xf32> to vector<2x4x2x1xf32>
    %cst_28 = arith.constant dense<0.000000e+00> : vector<2x4x1xf32>
    %38 = vector.multi_reduction <add>, %37, %cst_28 [2] : vector<2x4x2x1xf32> to vector<2x4x1xf32>
    %39 = vector.shape_cast %38 : vector<2x4x1xf32> to vector<2x4x1x1xf32>
    %40 = arith.addf %35, %39 : vector<2x4x1x1xf32>
    %c0_29 = arith.constant 0 : index
    %c0_30 = arith.constant 0 : index
    %c0_31 = arith.constant 0 : index
    %c0_32 = arith.constant 0 : index
    %41 = vector.load %arg6[%c0_29, %c0_30, %c0_31, %c0_32] : memref<2x4x1x1xf32, #tpu.memory_space<vmem>>, vector<2x4x1x1xf32>
    tpu.vector_store %arg6[%c0_29, %c0_30, %c0_31, %c0_32], %40 {strides = array<i32>} : memref<2x4x1x1xf32, #tpu.memory_space<vmem>>, vector<2x4x1x1xf32>,
    %c0_33 = arith.constant 0 : index
    %c0_34 = arith.constant 0 : index
    %c0_35 = arith.constant 0 : index
    %c0_36 = arith.constant 0 : index
    %42 = vector.load %arg7[%c0_33, %c0_34, %c0_35, %c0_36] : memref<2x4x1x1xf32, #tpu.memory_space<vmem>>, vector<2x4x1x1xf32>
    %cst_37 = arith.constant dense<0.000000e+00> : vector<2x4x2xf32>
    %43 = vector.multi_reduction <add>, %24, %cst_37 [3] : vector<2x4x2x128xf32> to vector<2x4x2xf32>
    %44 = vector.shape_cast %43 : vector<2x4x2xf32> to vector<2x4x2x1xf32>
    %cst_38 = arith.constant dense<0.000000e+00> : vector<2x4x1xf32>
    %45 = vector.multi_reduction <add>, %44, %cst_38 [2] : vector<2x4x2x1xf32> to vector<2x4x1xf32>
    %46 = vector.shape_cast %45 : vector<2x4x1xf32> to vector<2x4x1x1xf32>
    %47 = arith.addf %42, %46 : vector<2x4x1x1xf32>
    %c0_39 = arith.constant 0 : index
    %c0_40 = arith.constant 0 : index
    %c0_41 = arith.constant 0 : index
    %c0_42 = arith.constant 0 : index
    %48 = vector.load %arg7[%c0_39, %c0_40, %c0_41, %c0_42] : memref<2x4x1x1xf32, #tpu.memory_space<vmem>>, vector<2x4x1x1xf32>
    tpu.vector_store %arg7[%c0_39, %c0_40, %c0_41, %c0_42], %47 {strides = array<i32>} : memref<2x4x1x1xf32, #tpu.memory_space<vmem>>, vector<2x4x1x1xf32>,
    %c0_43 = arith.constant 0 : index
    %c0_44 = arith.constant 0 : index
    %c0_45 = arith.constant 0 : index
    %c0_46 = arith.constant 0 : index
    %49 = vector.load %arg8[%c0_43, %c0_44, %c0_45, %c0_46] : memref<2x4x1x1xf32, #tpu.memory_space<vmem>>, vector<2x4x1x1xf32>
    %cst_47 = arith.constant dense<0.000000e+00> : vector<2x4x2xf32>
    %50 = vector.multi_reduction <add>, %27, %cst_47 [3] : vector<2x4x2x128xf32> to vector<2x4x2xf32>
    %51 = vector.shape_cast %50 : vector<2x4x2xf32> to vector<2x4x2x1xf32>
    %cst_48 = arith.constant dense<0.000000e+00> : vector<2x4x1xf32>
    %52 = vector.multi_reduction <add>, %51, %cst_48 [2] : vector<2x4x2x1xf32> to vector<2x4x1xf32>
    %53 = vector.shape_cast %52 : vector<2x4x1xf32> to vector<2x4x1x1xf32>
    %54 = arith.addf %49, %53 : vector<2x4x1x1xf32>
    %c0_49 = arith.constant 0 : index
    %c0_50 = arith.constant 0 : index
    %c0_51 = arith.constant 0 : index
    %c0_52 = arith.constant 0 : index
    %55 = vector.load %arg8[%c0_49, %c0_50, %c0_51, %c0_52] : memref<2x4x1x1xf32, #tpu.memory_space<vmem>>, vector<2x4x1x1xf32>
    tpu.vector_store %arg8[%c0_49, %c0_50, %c0_51, %c0_52], %54 {strides = array<i32>} : memref<2x4x1x1xf32, #tpu.memory_space<vmem>>, vector<2x4x1x1xf32>,
    %c0_53 = arith.constant 0 : index
    %c0_54 = arith.constant 0 : index
    %c0_55 = arith.constant 0 : index
    %c0_56 = arith.constant 0 : index
    %56 = vector.load %arg9[%c0_53, %c0_54, %c0_55, %c0_56] : memref<2x1x1x1xf32, #tpu.memory_space<vmem>>, vector<2x1x1x1xf32>
    %57 = vector.extract_strided_slice %16 {offsets = [0, 1, 0, 0], sizes = [2, 1, 2, 128], strides = [1, 1, 1, 1]} : vector<2x4x2x128xf32> to vector<2x1x2x128xf32>
    %58 = vector.extract_strided_slice %4 {offsets = [0, 1, 0, 0], sizes = [2, 1, 2, 128], strides = [1, 1, 1, 1]} : vector<2x4x2x128xf32> to vector<2x1x2x128xf32>
    %59 = arith.mulf %57, %58 : vector<2x1x2x128xf32>
    %cst_57 = arith.constant dense<0.000000e+00> : vector<2x1x2xf32>
    %60 = vector.multi_reduction <add>, %59, %cst_57 [3] : vector<2x1x2x128xf32> to vector<2x1x2xf32>
    %61 = vector.shape_cast %60 : vector<2x1x2xf32> to vector<2x1x2x1xf32>
    %cst_58 = arith.constant dense<0.000000e+00> : vector<2x1x1xf32>
    %62 = vector.multi_reduction <add>, %61, %cst_58 [2] : vector<2x1x2x1xf32> to vector<2x1x1xf32>
    %63 = vector.shape_cast %62 : vector<2x1x1xf32> to vector<2x1x1x1xf32>
    %64 = arith.addf %56, %63 : vector<2x1x1x1xf32>
    %c0_59 = arith.constant 0 : index
    %c0_60 = arith.constant 0 : index
    %c0_61 = arith.constant 0 : index
    %c0_62 = arith.constant 0 : index
    %65 = vector.load %arg9[%c0_59, %c0_60, %c0_61, %c0_62] : memref<2x1x1x1xf32, #tpu.memory_space<vmem>>, vector<2x1x1x1xf32>
    tpu.vector_store %arg9[%c0_59, %c0_60, %c0_61, %c0_62], %64 {strides = array<i32>} : memref<2x1x1x1xf32, #tpu.memory_space<vmem>>, vector<2x1x1x1xf32>,
    %c0_63 = arith.constant 0 : index
    %c0_64 = arith.constant 0 : index
    %c0_65 = arith.constant 0 : index
    %c0_66 = arith.constant 0 : index
    %66 = vector.load %arg10[%c0_63, %c0_64, %c0_65, %c0_66] : memref<2x1x1x1xf32, #tpu.memory_space<vmem>>, vector<2x1x1x1xf32>
    %67 = vector.extract_strided_slice %16 {offsets = [0, 2, 0, 0], sizes = [2, 1, 2, 128], strides = [1, 1, 1, 1]} : vector<2x4x2x128xf32> to vector<2x1x2x128xf32>
    %68 = vector.extract_strided_slice %4 {offsets = [0, 2, 0, 0], sizes = [2, 1, 2, 128], strides = [1, 1, 1, 1]} : vector<2x4x2x128xf32> to vector<2x1x2x128xf32>
    %69 = arith.mulf %67, %68 : vector<2x1x2x128xf32>
    %cst_67 = arith.constant dense<0.000000e+00> : vector<2x1x2xf32>
    %70 = vector.multi_reduction <add>, %69, %cst_67 [3] : vector<2x1x2x128xf32> to vector<2x1x2xf32>
    %71 = vector.shape_cast %70 : vector<2x1x2xf32> to vector<2x1x2x1xf32>
    %cst_68 = arith.constant dense<0.000000e+00> : vector<2x1x1xf32>
    %72 = vector.multi_reduction <add>, %71, %cst_68 [2] : vector<2x1x2x1xf32> to vector<2x1x1xf32>
    %73 = vector.shape_cast %72 : vector<2x1x1xf32> to vector<2x1x1x1xf32>
    %74 = arith.addf %66, %73 : vector<2x1x1x1xf32>
    %c0_69 = arith.constant 0 : index
    %c0_70 = arith.constant 0 : index
    %c0_71 = arith.constant 0 : index
    %c0_72 = arith.constant 0 : index
    %75 = vector.load %arg10[%c0_69, %c0_70, %c0_71, %c0_72] : memref<2x1x1x1xf32, #tpu.memory_space<vmem>>, vector<2x1x1x1xf32>
    tpu.vector_store %arg10[%c0_69, %c0_70, %c0_71, %c0_72], %74 {strides = array<i32>} : memref<2x1x1x1xf32, #tpu.memory_space<vmem>>, vector<2x1x1x1xf32>,
    %c0_i32_73 = arith.constant 0 : i32
    %76 = arith.cmpi eq, %arg1, %c0_i32_73 : i32
    %77 = arith.extui %76 : i1 to i32
    %c0_i32_74 = arith.constant 0 : i32
    %78 = arith.cmpi ne, %77, %c0_i32_74 : i32
    scf.if %78 {
      %c0_75 = arith.constant 0 : index
      %c0_76 = arith.constant 0 : index
      %c0_77 = arith.constant 0 : index
      %c0_78 = arith.constant 0 : index
      %79 = vector.load %arg5[%c0_75, %c0_76, %c0_77, %c0_78] : memref<2x4x1x1xf32, #tpu.memory_space<vmem>>, vector<2x4x1x1xf32>
      %c0_79 = arith.constant 0 : index
      %c0_80 = arith.constant 0 : index
      %c0_81 = arith.constant 0 : index
      %c0_82 = arith.constant 0 : index
      %80 = vector.load %arg6[%c0_79, %c0_80, %c0_81, %c0_82] : memref<2x4x1x1xf32, #tpu.memory_space<vmem>>, vector<2x4x1x1xf32>
      %c0_83 = arith.constant 0 : index
      %c0_84 = arith.constant 0 : index
      %c0_85 = arith.constant 0 : index
      %c0_86 = arith.constant 0 : index
      %81 = vector.load %arg9[%c0_83, %c0_84, %c0_85, %c0_86] : memref<2x1x1x1xf32, #tpu.memory_space<vmem>>, vector<2x1x1x1xf32>
      %82 = vector.shape_cast %81 : vector<2x1x1x1xf32> to vector<2x1x1xf32>
      %c0_87 = arith.constant 0 : index
      %c0_88 = arith.constant 0 : index
      %c0_89 = arith.constant 0 : index
      %c0_90 = arith.constant 0 : index
      %83 = vector.load %arg10[%c0_87, %c0_88, %c0_89, %c0_90] : memref<2x1x1x1xf32, #tpu.memory_space<vmem>>, vector<2x1x1x1xf32>
      %84 = vector.shape_cast %83 : vector<2x1x1x1xf32> to vector<2x1x1xf32>
      %cst_91 = arith.constant 2.000000e+00 : f32
      %85 = vector.broadcast %cst_91 : f32 to vector<2x1x1xf32>
      %86 = arith.mulf %85, %82 : vector<2x1x1xf32>
      %cst_92 = arith.constant 9.99999974E-6 : f32
      %87 = vector.broadcast %cst_92 : f32 to vector<2x1x1xf32>
      %88 = arith.addf %86, %87 : vector<2x1x1xf32>
      %89 = vector.extract_strided_slice %79 {offsets = [0, 1, 0, 0], sizes = [2, 1, 1, 1], strides = [1, 1, 1, 1]} : vector<2x4x1x1xf32> to vector<2x1x1x1xf32>
      %90 = vector.shape_cast %89 : vector<2x1x1x1xf32> to vector<2x1x1xf32>
      %91 = vector.extract_strided_slice %80 {offsets = [0, 1, 0, 0], sizes = [2, 1, 1, 1], strides = [1, 1, 1, 1]} : vector<2x4x1x1xf32> to vector<2x1x1x1xf32>
      %92 = vector.shape_cast %91 : vector<2x1x1x1xf32> to vector<2x1x1xf32>
      %93 = arith.addf %90, %92 : vector<2x1x1xf32>
      %cst_93 = arith.constant 9.99999974E-6 : f32
      %94 = vector.broadcast %cst_93 : f32 to vector<2x1x1xf32>
      %95 = arith.addf %93, %94 : vector<2x1x1xf32>
      %96 = arith.divf %88, %95 : vector<2x1x1xf32>
      %cst_94 = arith.constant 2.000000e+00 : f32
      %97 = vector.broadcast %cst_94 : f32 to vector<2x1x1xf32>
      %98 = arith.mulf %97, %84 : vector<2x1x1xf32>
      %cst_95 = arith.constant 9.99999974E-6 : f32
      %99 = vector.broadcast %cst_95 : f32 to vector<2x1x1xf32>
      %100 = arith.addf %98, %99 : vector<2x1x1xf32>
      %101 = vector.extract_strided_slice %79 {offsets = [0, 2, 0, 0], sizes = [2, 1, 1, 1], strides = [1, 1, 1, 1]} : vector<2x4x1x1xf32> to vector<2x1x1x1xf32>
      %102 = vector.shape_cast %101 : vector<2x1x1x1xf32> to vector<2x1x1xf32>
      %103 = vector.extract_strided_slice %80 {offsets = [0, 2, 0, 0], sizes = [2, 1, 1, 1], strides = [1, 1, 1, 1]} : vector<2x4x1x1xf32> to vector<2x1x1x1xf32>
      %104 = vector.shape_cast %103 : vector<2x1x1x1xf32> to vector<2x1x1xf32>
      %105 = arith.addf %102, %104 : vector<2x1x1xf32>
      %cst_96 = arith.constant 9.99999974E-6 : f32
      %106 = vector.broadcast %cst_96 : f32 to vector<2x1x1xf32>
      %107 = arith.addf %105, %106 : vector<2x1x1xf32>
      %108 = arith.divf %100, %107 : vector<2x1x1xf32>
      %c0_97 = arith.constant 0 : index
      %c0_98 = arith.constant 0 : index
      %c0_99 = arith.constant 0 : index
      %c0_100 = arith.constant 0 : index
      %109 = vector.load %arg7[%c0_97, %c0_98, %c0_99, %c0_100] : memref<2x4x1x1xf32, #tpu.memory_space<vmem>>, vector<2x4x1x1xf32>
      %cst_101 = arith.constant dense<0.000000e+00> : vector<4x1x1xf32>
      %110 = vector.multi_reduction <add>, %109, %cst_101 [0] : vector<2x4x1x1xf32> to vector<4x1x1xf32>
      %cst_102 = arith.constant dense<0.000000e+00> : vector<1x1xf32>
      %111 = vector.multi_reduction <add>, %110, %cst_102 [0] : vector<4x1x1xf32> to vector<1x1xf32>
      %c0_103 = arith.constant 0 : index
      %c0_104 = arith.constant 0 : index
      %c0_105 = arith.constant 0 : index
      %c0_106 = arith.constant 0 : index
      %112 = vector.load %arg8[%c0_103, %c0_104, %c0_105, %c0_106] : memref<2x4x1x1xf32, #tpu.memory_space<vmem>>, vector<2x4x1x1xf32>
      %cst_107 = arith.constant dense<0.000000e+00> : vector<4x1x1xf32>
      %113 = vector.multi_reduction <add>, %112, %cst_107 [0] : vector<2x4x1x1xf32> to vector<4x1x1xf32>
      %cst_108 = arith.constant dense<0.000000e+00> : vector<1x1xf32>
      %114 = vector.multi_reduction <add>, %113, %cst_108 [0] : vector<4x1x1xf32> to vector<1x1xf32>
      %cst_109 = arith.constant dense<0.000000e+00> : vector<4x1x1xf32>
      %115 = vector.multi_reduction <add>, %79, %cst_109 [0] : vector<2x4x1x1xf32> to vector<4x1x1xf32>
      %cst_110 = arith.constant dense<0.000000e+00> : vector<1x1xf32>
      %116 = vector.multi_reduction <add>, %115, %cst_110 [0] : vector<4x1x1xf32> to vector<1x1xf32>
      %cst_111 = arith.constant dense<0.000000e+00> : vector<4x1x1xf32>
      %117 = vector.multi_reduction <add>, %80, %cst_111 [0] : vector<2x4x1x1xf32> to vector<4x1x1xf32>
      %cst_112 = arith.constant dense<0.000000e+00> : vector<1x1xf32>
      %118 = vector.multi_reduction <add>, %117, %cst_112 [0] : vector<4x1x1xf32> to vector<1x1xf32>
      %cst_113 = arith.constant dense<0.000000e+00> : vector<1x1xf32>
      %119 = vector.multi_reduction <add>, %96, %cst_113 [0] : vector<2x1x1xf32> to vector<1x1xf32>
      %cst_114 = arith.constant dense<0.000000e+00> : vector<1x1xf32>
      %120 = vector.multi_reduction <add>, %108, %cst_114 [0] : vector<2x1x1xf32> to vector<1x1xf32>
      %121 = tpu.iota {dimensions = array<i32: 2>} : vector<1x8x128xi32>
      %c0_i32_115 = arith.constant 0 : i32
      %122 = vector.broadcast %c0_i32_115 : i32 to vector<1x8x128xi32>
      %123 = arith.cmpi eq, %121, %122 : vector<1x8x128xi32>
      %cst_116 = arith.constant 1.000000e+00 : f32
      %cst_117 = arith.constant 0.000000e+00 : f32
      %124 = vector.broadcast %cst_116 : f32 to vector<1x8x128xf32>
      %125 = vector.broadcast %cst_117 : f32 to vector<1x8x128xf32>
      %126 = arith.select %123, %124, %125 : vector<1x8x128xi1>, vector<1x8x128xf32>
      %127 = vector.shape_cast %111 : vector<1x1xf32> to vector<1x1x1xf32>
      %128 = vector.broadcast %127 : vector<1x1x1xf32> to vector<1x8x128xf32>
      %129 = arith.mulf %126, %128 : vector<1x8x128xf32>
      %c1_i32 = arith.constant 1 : i32
      %130 = vector.broadcast %c1_i32 : i32 to vector<1x8x128xi32>
      %131 = arith.cmpi eq, %121, %130 : vector<1x8x128xi32>
      %cst_118 = arith.constant 1.000000e+00 : f32
      %cst_119 = arith.constant 0.000000e+00 : f32
      %132 = vector.broadcast %cst_118 : f32 to vector<1x8x128xf32>
      %133 = vector.broadcast %cst_119 : f32 to vector<1x8x128xf32>
      %134 = arith.select %131, %132, %133 : vector<1x8x128xi1>, vector<1x8x128xf32>
      %135 = vector.shape_cast %114 : vector<1x1xf32> to vector<1x1x1xf32>
      %136 = vector.broadcast %135 : vector<1x1x1xf32> to vector<1x8x128xf32>
      %137 = arith.mulf %134, %136 : vector<1x8x128xf32>
      %138 = arith.addf %129, %137 : vector<1x8x128xf32>
      %c2_i32 = arith.constant 2 : i32
      %139 = vector.broadcast %c2_i32 : i32 to vector<1x8x128xi32>
      %140 = arith.cmpi eq, %121, %139 : vector<1x8x128xi32>
      %cst_120 = arith.constant 1.000000e+00 : f32
      %cst_121 = arith.constant 0.000000e+00 : f32
      %141 = vector.broadcast %cst_120 : f32 to vector<1x8x128xf32>
      %142 = vector.broadcast %cst_121 : f32 to vector<1x8x128xf32>
      %143 = arith.select %140, %141, %142 : vector<1x8x128xi1>, vector<1x8x128xf32>
      %144 = vector.shape_cast %116 : vector<1x1xf32> to vector<1x1x1xf32>
      %145 = vector.broadcast %144 : vector<1x1x1xf32> to vector<1x8x128xf32>
      %146 = arith.mulf %143, %145 : vector<1x8x128xf32>
      %147 = arith.addf %138, %146 : vector<1x8x128xf32>
      %c3_i32 = arith.constant 3 : i32
      %148 = vector.broadcast %c3_i32 : i32 to vector<1x8x128xi32>
      %149 = arith.cmpi eq, %121, %148 : vector<1x8x128xi32>
      %cst_122 = arith.constant 1.000000e+00 : f32
      %cst_123 = arith.constant 0.000000e+00 : f32
      %150 = vector.broadcast %cst_122 : f32 to vector<1x8x128xf32>
      %151 = vector.broadcast %cst_123 : f32 to vector<1x8x128xf32>
      %152 = arith.select %149, %150, %151 : vector<1x8x128xi1>, vector<1x8x128xf32>
      %153 = vector.shape_cast %118 : vector<1x1xf32> to vector<1x1x1xf32>
      %154 = vector.broadcast %153 : vector<1x1x1xf32> to vector<1x8x128xf32>
      %155 = arith.mulf %152, %154 : vector<1x8x128xf32>
      %156 = arith.addf %147, %155 : vector<1x8x128xf32>
      %c4_i32 = arith.constant 4 : i32
      %157 = vector.broadcast %c4_i32 : i32 to vector<1x8x128xi32>
      %158 = arith.cmpi eq, %121, %157 : vector<1x8x128xi32>
      %cst_124 = arith.constant 1.000000e+00 : f32
      %cst_125 = arith.constant 0.000000e+00 : f32
      %159 = vector.broadcast %cst_124 : f32 to vector<1x8x128xf32>
      %160 = vector.broadcast %cst_125 : f32 to vector<1x8x128xf32>
      %161 = arith.select %158, %159, %160 : vector<1x8x128xi1>, vector<1x8x128xf32>
      %162 = vector.shape_cast %119 : vector<1x1xf32> to vector<1x1x1xf32>
      %163 = vector.broadcast %162 : vector<1x1x1xf32> to vector<1x8x128xf32>
      %164 = arith.mulf %161, %163 : vector<1x8x128xf32>
      %165 = arith.addf %156, %164 : vector<1x8x128xf32>
      %c5_i32 = arith.constant 5 : i32
      %166 = vector.broadcast %c5_i32 : i32 to vector<1x8x128xi32>
      %167 = arith.cmpi eq, %121, %166 : vector<1x8x128xi32>
      %cst_126 = arith.constant 1.000000e+00 : f32
      %cst_127 = arith.constant 0.000000e+00 : f32
      %168 = vector.broadcast %cst_126 : f32 to vector<1x8x128xf32>
      %169 = vector.broadcast %cst_127 : f32 to vector<1x8x128xf32>
      %170 = arith.select %167, %168, %169 : vector<1x8x128xi1>, vector<1x8x128xf32>
      %171 = vector.shape_cast %120 : vector<1x1xf32> to vector<1x1x1xf32>
      %172 = vector.broadcast %171 : vector<1x1x1xf32> to vector<1x8x128xf32>
      %173 = arith.mulf %170, %172 : vector<1x8x128xf32>
      %174 = arith.addf %165, %173 : vector<1x8x128xf32>
      %c0_128 = arith.constant 0 : index
      %c0_129 = arith.constant 0 : index
      %c0_130 = arith.constant 0 : index
      %175 = vector.load %arg4[%c0_128, %c0_129, %c0_130] : memref<1x8x128xf32, #tpu.memory_space<vmem>>, vector<1x8x128xf32>
      tpu.vector_store %arg4[%c0_128, %c0_129, %c0_130], %174 {strides = array<i32>} : memref<1x8x128xf32, #tpu.memory_space<vmem>>, vector<1x8x128xf32>,
    } else {
    }
    return
  }
  func.func @transform_0(%arg0: i32, %arg1: i32) -> (i32, i32, i32, i32) {
    %c0_i32 = arith.constant 0 : i32
    %c0_i32_0 = arith.constant 0 : i32
    %c0_i32_1 = arith.constant 0 : i32
    return %arg0, %c0_i32, %arg1, %c0_i32_0 : i32, i32, i32, i32
  }
  func.func @transform_1(%arg0: i32, %arg1: i32) -> (i32, i32, i32, i32) {
    %c0_i32 = arith.constant 0 : i32
    %c0_i32_0 = arith.constant 0 : i32
    %c0_i32_1 = arith.constant 0 : i32
    return %arg0, %c0_i32, %arg1, %c0_i32_0 : i32, i32, i32, i32
  }
  func.func @transform_2(%arg0: i32, %arg1: i32) -> (i32, i32, i32) {
    %c0_i32 = arith.constant 0 : i32
    %c0_i32_0 = arith.constant 0 : i32
    %c0_i32_1 = arith.constant 0 : i32
    return %arg0, %c0_i32, %c0_i32_0 : i32, i32, i32
  }
}

</mosaic_0001>

<llo_original>
// kernel: tpu_custom_call.1
$region0: #{tpu_custom_call.1}
  #allocation0 [shape = 'u32[]', space=smem, size = 0x4, offset = 0x4, fixed_abs, tag = 'smem constant byte address 0x4 - core index']
  #allocation1 [shape = 'u32[144,128]{1,0:T(1,128)}', space=vmem, size = 0x12000, scoped, tag = 'internal scratch']
  #allocation2 [shape = 'f32[2,4,1,1]{3,2,1,0:T(1,128)}', space=vmem, size = 0x1000, scoped, tag = 'scratch operand']
  #allocation3 [shape = 'f32[2,4,1,1]{3,2,1,0:T(1,128)}', space=vmem, size = 0x1000, scoped, tag = 'scratch operand']
  #allocation4 [shape = 'f32[2,4,1,1]{3,2,1,0:T(1,128)}', space=vmem, size = 0x1000, scoped, tag = 'scratch operand']
  #allocation5 [shape = 'f32[2,4,1,1]{3,2,1,0:T(1,128)}', space=vmem, size = 0x1000, scoped, tag = 'scratch operand']
  #allocation6 [shape = 'f32[2,1,1,1]{3,2,1,0:T(1,128)}', space=vmem, size = 0x400, scoped, tag = 'scratch operand']
  #allocation7 [shape = 'f32[2,1,1,1]{3,2,1,0:T(1,128)}', space=vmem, size = 0x400, scoped, tag = 'scratch operand']
  %s0 = inlined_call_operand.hbm [shape: f32[2,4,2,128], index: 0, kind: input, shape index: {}]
  %s1 = inlined_call_operand.hbm [shape: f32[2,4,2,128], index: 1, kind: input, shape index: {}]
  %s2 = inlined_call_operand.hbm [shape: f32[1,8,128], index: 2, kind: output, shape index: {}]
  %s3 = sld [smem:[#allocation0]]
  $region34: #{tpu_custom_call.1} parent=0
    _
  %s5 = ssub.s32 1, %s3
  %s6 = scalar_select 0, %s5, %s3
  $region1: #{tpu_custom_call.1} parent=0
    #allocation8 [shape = 'u8[8192]{0}', space=vmem, size = 0x2000, scoped, tag = 'input window, operand 0, single buffered']
    #allocation9 [shape = 's32[1]{0}', space=sflag, size = 0x4, scoped, tag = 'scoped memory for tpu_custom_call.1']
    #allocation10 [shape = 's32[1]{0}', space=sflag, size = 0x4, scoped, tag = 'scoped memory for tpu_custom_call.1']
    #allocation11 [shape = 'u8[8192]{0}', space=vmem, size = 0x2000, scoped, tag = 'input window, operand 1, single buffered']
    #allocation12 [shape = 's32[1]{0}', space=sflag, size = 0x4, scoped, tag = 'scoped memory for tpu_custom_call.1']
    #allocation13 [shape = 'u8[4096]{0}', space=vmem, size = 0x1000, scoped, tag = 'output window, operand 0, single buffered']
    %7 = vsyncpa [#allocation9], 0
    %8 = vsyncpa [#allocation12], 0
    %9 = vsyncpa [#allocation10], 0
    // Predicated region
    $region2: #{tpu_custom_call.1} parent=1 // pred_check
      _
    $region3: #{tpu_custom_call.1} parent=1 // pred_check_branch
      %11 = sbr.rel (0) target = $region5
    $region4: #{tpu_custom_call.1} parent=1 // pred_region
      %s13 = ssub.s32 256, 256
      %14 = vsyncadd [#allocation9], %s13
      %s15 = sshll.u32 [#allocation8], 4
      %s16 = int_to_ptr.vmem [resolvable:$true] %s15
      %21 = dma.hbm_to_vmem [thread:$0]  %s0, 256, %s16, [#allocation9], 32, 32, 2
    $region5: #{tpu_custom_call.1} parent=1 // pred_fallthru
      _
    // Predicated region
    $region6: #{tpu_custom_call.1} parent=1 // pred_check
      _
    $region7: #{tpu_custom_call.1} parent=1 // pred_check_branch
      %23 = sbr.rel (0) target = $region9
    $region8: #{tpu_custom_call.1} parent=1 // pred_region
      %s25 = ssub.s32 256, 256
      %26 = vsyncadd [#allocation12], %s25
      %s27 = sshll.u32 [#allocation11], 4
      %s28 = int_to_ptr.vmem [resolvable:$true] %s27
      %33 = dma.hbm_to_vmem [thread:$0]  %s1, 256, %s28, [#allocation12], 32, 32, 2
    $region9: #{tpu_custom_call.1} parent=1 // pred_fallthru
      _
    // Predicated region
    $region10: #{tpu_custom_call.1} parent=1 // pred_check
      _
    $region11: #{tpu_custom_call.1} parent=1 // pred_check_branch
      %35 = sbr.rel (0) target = $region13
    $region12: #{tpu_custom_call.1} parent=1 // pred_region
      %36 = dma.done [#allocation9], 256
    $region13: #{tpu_custom_call.1} parent=1 // pred_fallthru
      _
    // Predicated region
    $region14: #{tpu_custom_call.1} parent=1 // pred_check
      _
    $region15: #{tpu_custom_call.1} parent=1 // pred_check_branch
      %38 = sbr.rel (0) target = $region17
    $region16: #{tpu_custom_call.1} parent=1 // pred_region
      %39 = dma.done [#allocation12], 256
    $region17: #{tpu_custom_call.1} parent=1 // pred_fallthru
      _
    %p40 = scmp.eq.s32.totalorder 0, 0
    // Predicated region
    $region18: #{tpu_custom_call.1} parent=1 // pred_check
      %p41 = pneg %p40
    $region19: #{tpu_custom_call.1} parent=1 // pred_check_branch
      %43 = sbr.rel (%p41) target = $region21
    $region20: #{tpu_custom_call.1} parent=1 // pred_region
      %vm44 = vcmask 0
      %45 = vst.msk [vmem:[#allocation2] sm:$0x1] %vm44, 0.0
      %46 = vst.msk [vmem:[#allocation2 + $0x1] sm:$0x1] %vm44, 0.0
      %47 = vst.msk [vmem:[#allocation2 + $0x2] sm:$0x1] %vm44, 0.0
      %48 = vst.msk [vmem:[#allocation2 + $0x3] sm:$0x1] %vm44, 0.0
      %49 = vst.msk [vmem:[#allocation2 + $0x4] sm:$0x1] %vm44, 0.0
      %50 = vst.msk [vmem:[#allocation2 + $0x5] sm:$0x1] %vm44, 0.0
      %51 = vst.msk [vmem:[#allocation2 + $0x6] sm:$0x1] %vm44, 0.0
      %52 = vst.msk [vmem:[#allocation2 + $0x7] sm:$0x1] %vm44, 0.0
      %53 = vst.msk [vmem:[#allocation3] sm:$0x1] %vm44, 0.0
      %54 = vst.msk [vmem:[#allocation3 + $0x1] sm:$0x1] %vm44, 0.0
      %55 = vst.msk [vmem:[#allocation3 + $0x2] sm:$0x1] %vm44, 0.0
      %56 = vst.msk [vmem:[#allocation3 + $0x3] sm:$0x1] %vm44, 0.0
      %57 = vst.msk [vmem:[#allocation3 + $0x4] sm:$0x1] %vm44, 0.0
      %58 = vst.msk [vmem:[#allocation3 + $0x5] sm:$0x1] %vm44, 0.0
      %59 = vst.msk [vmem:[#allocation3 + $0x6] sm:$0x1] %vm44, 0.0
      %60 = vst.msk [vmem:[#allocation3 + $0x7] sm:$0x1] %vm44, 0.0
      %61 = vst.msk [vmem:[#allocation4] sm:$0x1] %vm44, 0.0
      %62 = vst.msk [vmem:[#allocation4 + $0x1] sm:$0x1] %vm44, 0.0
      %63 = vst.msk [vmem:[#allocation4 + $0x2] sm:$0x1] %vm44, 0.0
      %64 = vst.msk [vmem:[#allocation4 + $0x3] sm:$0x1] %vm44, 0.0
      %65 = vst.msk [vmem:[#allocation4 + $0x4] sm:$0x1] %vm44, 0.0
      %66 = vst.msk [vmem:[#allocation4 + $0x5] sm:$0x1] %vm44, 0.0
      %67 = vst.msk [vmem:[#allocation4 + $0x6] sm:$0x1] %vm44, 0.0
      %68 = vst.msk [vmem:[#allocation4 + $0x7] sm:$0x1] %vm44, 0.0
      %69 = vst.msk [vmem:[#allocation5] sm:$0x1] %vm44, 0.0
      %70 = vst.msk [vmem:[#allocation5 + $0x1] sm:$0x1] %vm44, 0.0
      %71 = vst.msk [vmem:[#allocation5 + $0x2] sm:$0x1] %vm44, 0.0
      %72 = vst.msk [vmem:[#allocation5 + $0x3] sm:$0x1] %vm44, 0.0
      %73 = vst.msk [vmem:[#allocation5 + $0x4] sm:$0x1] %vm44, 0.0
      %74 = vst.msk [vmem:[#allocation5 + $0x5] sm:$0x1] %vm44, 0.0
      %75 = vst.msk [vmem:[#allocation5 + $0x6] sm:$0x1] %vm44, 0.0
      %76 = vst.msk [vmem:[#allocation5 + $0x7] sm:$0x1] %vm44, 0.0
      %77 = vst.msk [vmem:[#allocation6] sm:$0x1] %vm44, 0.0
      %78 = vst.msk [vmem:[#allocation6 + $0x1] sm:$0x1] %vm44, 0.0
      %79 = vst.msk [vmem:[#allocation7] sm:$0x1] %vm44, 0.0
      %80 = vst.msk [vmem:[#allocation7 + $0x1] sm:$0x1] %vm44, 0.0
    $region21: #{tpu_custom_call.1} parent=1 // pred_fallthru
      _
    %v81 = vld [vmem:[#allocation8] sm:$0x3]
    %v82 = vld [vmem:[#allocation8 + $0x2] sm:$0x3]
    %v83 = vld [vmem:[#allocation8 + $0x4] sm:$0x3]
    %v84 = vld [vmem:[#allocation8 + $0x6] sm:$0x3]
    %v85 = vld [vmem:[#allocation8 + $0x8] sm:$0x3]
    %v86 = vld [vmem:[#allocation8 + $0xa] sm:$0x3]
    %v87 = vld [vmem:[#allocation8 + $0xc] sm:$0x3]
    %v88 = vld [vmem:[#allocation8 + $0xe] sm:$0x3]
    %v89 = vld [vmem:[#allocation11] sm:$0x3]
    %v90 = vld [vmem:[#allocation11 + $0x2] sm:$0x3]
    %v91 = vld [vmem:[#allocation11 + $0x4] sm:$0x3]
    %v92 = vld [vmem:[#allocation11 + $0x6] sm:$0x3]
    %v93 = vld [vmem:[#allocation11 + $0x8] sm:$0x3]
    %v94 = vld [vmem:[#allocation11 + $0xa] sm:$0x3]
    %v95 = vld [vmem:[#allocation11 + $0xc] sm:$0x3]
    %v96 = vld [vmem:[#allocation11 + $0xe] sm:$0x3]
    %v97 = vand.u32 2147483647, %v81
    %v98 = vand.u32 2147483647, %v82
    %v99 = vand.u32 2147483647, %v83
    %v100 = vand.u32 2147483647, %v84
    %v101 = vand.u32 2147483647, %v85
    %v102 = vand.u32 2147483647, %v86
    %v103 = vand.u32 2147483647, %v87
    %v104 = vand.u32 2147483647, %v88
    %v105 = vsub.f32 0.0, %v97
    %v106 = vsub.f32 0.0, %v98
    %v107 = vsub.f32 0.0, %v99
    %v108 = vsub.f32 0.0, %v100
    %v109 = vsub.f32 0.0, %v101
    %v110 = vsub.f32 0.0, %v102
    %v111 = vsub.f32 0.0, %v103
    %v112 = vsub.f32 0.0, %v104
    %v113 = vmul.f32 %v105, 1.442695
    %v114 = vpow.pop %v113
    %v115 = vmul.f32 %v106, 1.442695
    %v116 = vpow.pop %v115
    %v117 = vmul.f32 %v107, 1.442695
    %v118 = vpow.pop %v117
    %v119 = vmul.f32 %v108, 1.442695
    %v120 = vpow.pop %v119
    %v121 = vmul.f32 %v109, 1.442695
    %v122 = vpow.pop %v121
    %v123 = vmul.f32 %v110, 1.442695
    %v124 = vpow.pop %v123
    %v125 = vmul.f32 %v111, 1.442695
    %v126 = vpow.pop %v125
    %v127 = vmul.f32 %v112, 1.442695
    %v128 = vpow.pop %v127
    %v129 = vadd.f32 %v114, 1.0
    %v130 = vadd.f32 %v116, 1.0
    %v131 = vadd.f32 %v118, 1.0
    %v132 = vadd.f32 %v120, 1.0
    %v133 = vadd.f32 %v122, 1.0
    %v134 = vadd.f32 %v124, 1.0
    %v135 = vadd.f32 %v126, 1.0
    %v136 = vadd.f32 %v128, 1.0
    %v137 = vrcp.pop %v129
    %v138 = vmul.f32 1.0, %v137
    %v139 = vrcp.pop %v130
    %v140 = vmul.f32 1.0, %v139
    %v141 = vrcp.pop %v131
    %v142 = vmul.f32 1.0, %v141
    %v143 = vrcp.pop %v132
    %v144 = vmul.f32 1.0, %v143
    %v145 = vrcp.pop %v133
    %v146 = vmul.f32 1.0, %v145
    %v147 = vrcp.pop %v134
    %v148 = vmul.f32 1.0, %v147
    %v149 = vrcp.pop %v135
    %v150 = vmul.f32 1.0, %v149
    %v151 = vrcp.pop %v136
    %v152 = vmul.f32 1.0, %v151
    %vm153 = vcmp.ge.f32.partialorder %v81, 0.0
    %vm154 = vcmp.ge.f32.partialorder %v82, 0.0
    %vm155 = vcmp.ge.f32.partialorder %v83, 0.0
    %vm156 = vcmp.ge.f32.partialorder %v84, 0.0
    %vm157 = vcmp.ge.f32.partialorder %v85, 0.0
    %vm158 = vcmp.ge.f32.partialorder %v86, 0.0
    %vm159 = vcmp.ge.f32.partialorder %v87, 0.0
    %vm160 = vcmp.ge.f32.partialorder %v88, 0.0
    %v161 = vmul.f32 %v114, %v138
    %v162 = vmul.f32 %v116, %v140
    %v163 = vmul.f32 %v118, %v142
    %v164 = vmul.f32 %v120, %v144
    %v165 = vmul.f32 %v122, %v146
    %v166 = vmul.f32 %v124, %v148
    %v167 = vmul.f32 %v126, %v150
    %v168 = vmul.f32 %v128, %v152
    %v169 = vsel %vm153, %v138, %v161
    %v170 = vsel %vm154, %v140, %v162
    %v171 = vsel %vm155, %v142, %v163
    %v172 = vsel %vm156, %v144, %v164
    %v173 = vsel %vm157, %v146, %v165
    %v174 = vsel %vm158, %v148, %v166
    %v175 = vsel %vm159, %v150, %v167
    %v176 = vsel %vm160, %v152, %v168
    %v177 = vmax.f32 %v81, 0.0
    %v178 = vmax.f32 %v82, 0.0
    %v179 = vmax.f32 %v83, 0.0
    %v180 = vmax.f32 %v84, 0.0
    %v181 = vmax.f32 %v85, 0.0
    %v182 = vmax.f32 %v86, 0.0
    %v183 = vmax.f32 %v87, 0.0
    %v184 = vmax.f32 %v88, 0.0
    %v185 = vmul.f32 %v81, %v89
    %v186 = vmul.f32 %v82, %v90
    %v187 = vmul.f32 %v83, %v91
    %v188 = vmul.f32 %v84, %v92
    %v189 = vmul.f32 %v85, %v93
    %v190 = vmul.f32 %v86, %v94
    %v191 = vmul.f32 %v87, %v95
    %v192 = vmul.f32 %v88, %v96
    %v193 = vsub.f32 %v177, %v185
    %v194 = vsub.f32 %v178, %v186
    %v195 = vsub.f32 %v179, %v187
    %v196 = vsub.f32 %v180, %v188
    %v197 = vsub.f32 %v181, %v189
    %v198 = vsub.f32 %v182, %v190
    %v199 = vsub.f32 %v183, %v191
    %v200 = vsub.f32 %v184, %v192
    %v201 = vlog2.pop %v129
    %v202 = vmul.f32 %v201, 0.6931472
    %v203 = vlog2.pop %v130
    %v204 = vmul.f32 %v203, 0.6931472
    %v205 = vlog2.pop %v131
    %v206 = vmul.f32 %v205, 0.6931472
    %v207 = vlog2.pop %v132
    %v208 = vmul.f32 %v207, 0.6931472
    %v209 = vlog2.pop %v133
    %v210 = vmul.f32 %v209, 0.6931472
    %v211 = vlog2.pop %v134
    %v212 = vmul.f32 %v211, 0.6931472
    %v213 = vlog2.pop %v135
    %v214 = vmul.f32 %v213, 0.6931472
    %v215 = vlog2.pop %v136
    %v216 = vmul.f32 %v215, 0.6931472
    %v217 = vadd.f32 %v193, %v202
    %v218 = vadd.f32 %v194, %v204
    %v219 = vadd.f32 %v195, %v206
    %v220 = vadd.f32 %v196, %v208
    %v221 = vadd.f32 %v197, %v210
    %v222 = vadd.f32 %v198, %v212
    %v223 = vadd.f32 %v199, %v214
    %v224 = vadd.f32 %v200, %v216
    %v225 = vsub.f32 %v81, %v89
    %v226 = vsub.f32 %v82, %v90
    %v227 = vsub.f32 %v83, %v91
    %v228 = vsub.f32 %v84, %v92
    %v229 = vsub.f32 %v85, %v93
    %v230 = vsub.f32 %v86, %v94
    %v231 = vsub.f32 %v87, %v95
    %v232 = vsub.f32 %v88, %v96
    %v233 = vmul.f32 %v225, %v225
    %v234 = vmul.f32 %v226, %v226
    %v235 = vmul.f32 %v227, %v227
    %v236 = vmul.f32 %v228, %v228
    %v237 = vmul.f32 %v229, %v229
    %v238 = vmul.f32 %v230, %v230
    %v239 = vmul.f32 %v231, %v231
    %v240 = vmul.f32 %v232, %v232
    %v241 = vld [vmem:[#allocation2] sm:$0x1]
    %v242 = vld [vmem:[#allocation2 + $0x1] sm:$0x1]
    %v243 = vld [vmem:[#allocation2 + $0x2] sm:$0x1]
    %v244 = vld [vmem:[#allocation2 + $0x3] sm:$0x1]
    %v245 = vld [vmem:[#allocation2 + $0x4] sm:$0x1]
    %v246 = vld [vmem:[#allocation2 + $0x5] sm:$0x1]
    %v247 = vld [vmem:[#allocation2 + $0x6] sm:$0x1]
    %v248 = vld [vmem:[#allocation2 + $0x7] sm:$0x1]
    %vm249 = vcmask 1041408
    %v250 = vsel %vm249, %v169, 0.0
    %251 = vadd.xlane.f32.xlu0 %v250
    %v252 = vpop.xlane.xlu0 %251
    %v253 = vsel %vm249, %v170, 0.0
    %254 = vadd.xlane.f32.xlu0 %v253
    %v255 = vpop.xlane.xlu0 %254
    %v256 = vsel %vm249, %v171, 0.0
    %257 = vadd.xlane.f32.xlu0 %v256
    %v258 = vpop.xlane.xlu0 %257
    %v259 = vsel %vm249, %v172, 0.0
    %260 = vadd.xlane.f32.xlu0 %v259
    %v261 = vpop.xlane.xlu0 %260
    %v262 = vsel %vm249, %v173, 0.0
    %263 = vadd.xlane.f32.xlu0 %v262
    %v264 = vpop.xlane.xlu0 %263
    %v265 = vsel %vm249, %v174, 0.0
    %266 = vadd.xlane.f32.xlu0 %v265
    %v267 = vpop.xlane.xlu0 %266
    %v268 = vsel %vm249, %v175, 0.0
    %269 = vadd.xlane.f32.xlu0 %v268
    %v270 = vpop.xlane.xlu0 %269
    %v271 = vsel %vm249, %v176, 0.0
    %272 = vadd.xlane.f32.xlu0 %v271
    %v273 = vpop.xlane.xlu0 %272
    %v274 = vsel %vm249, %v252, 0.0
    %v275 = vrot.slane %v274, 4
    %v276 = vadd.f32 %v274, %v275
    %v277 = vrot.slane %v276, 2
    %v278 = vadd.f32 %v276, %v277
    %v279 = vrot.slane %v278, 1
    %v280 = vadd.f32 %v278, %v279
    %v281 = vsel %vm249, %v255, 0.0
    %v282 = vrot.slane %v281, 4
    %v283 = vadd.f32 %v281, %v282
    %v284 = vrot.slane %v283, 2
    %v285 = vadd.f32 %v283, %v284
    %v286 = vrot.slane %v285, 1
    %v287 = vadd.f32 %v285, %v286
    %v288 = vsel %vm249, %v258, 0.0
    %v289 = vrot.slane %v288, 4
    %v290 = vadd.f32 %v288, %v289
    %v291 = vrot.slane %v290, 2
    %v292 = vadd.f32 %v290, %v291
    %v293 = vrot.slane %v292, 1
    %v294 = vadd.f32 %v292, %v293
    %v295 = vsel %vm249, %v261, 0.0
    %v296 = vrot.slane %v295, 4
    %v297 = vadd.f32 %v295, %v296
    %v298 = vrot.slane %v297, 2
    %v299 = vadd.f32 %v297, %v298
    %v300 = vrot.slane %v299, 1
    %v301 = vadd.f32 %v299, %v300
    %v302 = vsel %vm249, %v264, 0.0
    %v303 = vrot.slane %v302, 4
    %v304 = vadd.f32 %v302, %v303
    %v305 = vrot.slane %v304, 2
    %v306 = vadd.f32 %v304, %v305
    %v307 = vrot.slane %v306, 1
    %v308 = vadd.f32 %v306, %v307
    %v309 = vsel %vm249, %v267, 0.0
    %v310 = vrot.slane %v309, 4
    %v311 = vadd.f32 %v309, %v310
    %v312 = vrot.slane %v311, 2
    %v313 = vadd.f32 %v311, %v312
    %v314 = vrot.slane %v313, 1
    %v315 = vadd.f32 %v313, %v314
    %v316 = vsel %vm249, %v270, 0.0
    %v317 = vrot.slane %v316, 4
    %v318 = vadd.f32 %v316, %v317
    %v319 = vrot.slane %v318, 2
    %v320 = vadd.f32 %v318, %v319
    %v321 = vrot.slane %v320, 1
    %v322 = vadd.f32 %v320, %v321
    %v323 = vsel %vm249, %v273, 0.0
    %v324 = vrot.slane %v323, 4
    %v325 = vadd.f32 %v323, %v324
    %v326 = vrot.slane %v325, 2
    %v327 = vadd.f32 %v325, %v326
    %v328 = vrot.slane %v327, 1
    %v329 = vadd.f32 %v327, %v328
    %v330 = vadd.f32 %v241, %v280
    %v331 = vadd.f32 %v242, %v287
    %v332 = vadd.f32 %v243, %v294
    %v333 = vadd.f32 %v244, %v301
    %v334 = vadd.f32 %v245, %v308
    %v335 = vadd.f32 %v246, %v315
    %v336 = vadd.f32 %v247, %v322
    %v337 = vadd.f32 %v248, %v329
    %vm338 = vcmask 0
    %339 = vst.msk [vmem:[#allocation2] sm:$0x1] %vm338, %v330
    %340 = vst.msk [vmem:[#allocation2 + $0x1] sm:$0x1] %vm338, %v331
    %341 = vst.msk [vmem:[#allocation2 + $0x2] sm:$0x1] %vm338, %v332
    %342 = vst.msk [vmem:[#allocation2 + $0x3] sm:$0x1] %vm338, %v333
    %343 = vst.msk [vmem:[#allocation2 + $0x4] sm:$0x1] %vm338, %v334
    %344 = vst.msk [vmem:[#allocation2 + $0x5] sm:$0x1] %vm338, %v335
    %345 = vst.msk [vmem:[#allocation2 + $0x6] sm:$0x1] %vm338, %v336
    %346 = vst.msk [vmem:[#allocation2 + $0x7] sm:$0x1] %vm338, %v337
    %v347 = vld [vmem:[#allocation3] sm:$0x1]
    %v348 = vld [vmem:[#allocation3 + $0x1] sm:$0x1]
    %v349 = vld [vmem:[#allocation3 + $0x2] sm:$0x1]
    %v350 = vld [vmem:[#allocation3 + $0x3] sm:$0x1]
    %v351 = vld [vmem:[#allocation3 + $0x4] sm:$0x1]
    %v352 = vld [vmem:[#allocation3 + $0x5] sm:$0x1]
    %v353 = vld [vmem:[#allocation3 + $0x6] sm:$0x1]
    %v354 = vld [vmem:[#allocation3 + $0x7] sm:$0x1]
    %v355 = vsel %vm249, %v89, 0.0
    %356 = vadd.xlane.f32.xlu0 %v355
    %v357 = vpop.xlane.xlu0 %356
    %v358 = vsel %vm249, %v90, 0.0
    %359 = vadd.xlane.f32.xlu0 %v358
    %v360 = vpop.xlane.xlu0 %359
    %v361 = vsel %vm249, %v91, 0.0
    %362 = vadd.xlane.f32.xlu0 %v361
    %v363 = vpop.xlane.xlu0 %362
    %v364 = vsel %vm249, %v92, 0.0
    %365 = vadd.xlane.f32.xlu0 %v364
    %v366 = vpop.xlane.xlu0 %365
    %v367 = vsel %vm249, %v93, 0.0
    %368 = vadd.xlane.f32.xlu0 %v367
    %v369 = vpop.xlane.xlu0 %368
    %v370 = vsel %vm249, %v94, 0.0
    %371 = vadd.xlane.f32.xlu0 %v370
    %v372 = vpop.xlane.xlu0 %371
    %v373 = vsel %vm249, %v95, 0.0
    %374 = vadd.xlane.f32.xlu0 %v373
    %v375 = vpop.xlane.xlu0 %374
    %v376 = vsel %vm249, %v96, 0.0
    %377 = vadd.xlane.f32.xlu0 %v376
    %v378 = vpop.xlane.xlu0 %377
    %v379 = vsel %vm249, %v357, 0.0
    %v380 = vrot.slane %v379, 4
    %v381 = vadd.f32 %v379, %v380
    %v382 = vrot.slane %v381, 2
    %v383 = vadd.f32 %v381, %v382
    %v384 = vrot.slane %v383, 1
    %v385 = vadd.f32 %v383, %v384
    %v386 = vsel %vm249, %v360, 0.0
    %v387 = vrot.slane %v386, 4
    %v388 = vadd.f32 %v386, %v387
    %v389 = vrot.slane %v388, 2
    %v390 = vadd.f32 %v388, %v389
    %v391 = vrot.slane %v390, 1
    %v392 = vadd.f32 %v390, %v391
    %v393 = vsel %vm249, %v363, 0.0
    %v394 = vrot.slane %v393, 4
    %v395 = vadd.f32 %v393, %v394
    %v396 = vrot.slane %v395, 2
    %v397 = vadd.f32 %v395, %v396
    %v398 = vrot.slane %v397, 1
    %v399 = vadd.f32 %v397, %v398
    %v400 = vsel %vm249, %v366, 0.0
    %v401 = vrot.slane %v400, 4
    %v402 = vadd.f32 %v400, %v401
    %v403 = vrot.slane %v402, 2
    %v404 = vadd.f32 %v402, %v403
    %v405 = vrot.slane %v404, 1
    %v406 = vadd.f32 %v404, %v405
    %v407 = vsel %vm249, %v369, 0.0
    %v408 = vrot.slane %v407, 4
    %v409 = vadd.f32 %v407, %v408
    %v410 = vrot.slane %v409, 2
    %v411 = vadd.f32 %v409, %v410
    %v412 = vrot.slane %v411, 1
    %v413 = vadd.f32 %v411, %v412
    %v414 = vsel %vm249, %v372, 0.0
    %v415 = vrot.slane %v414, 4
    %v416 = vadd.f32 %v414, %v415
    %v417 = vrot.slane %v416, 2
    %v418 = vadd.f32 %v416, %v417
    %v419 = vrot.slane %v418, 1
    %v420 = vadd.f32 %v418, %v419
    %v421 = vsel %vm249, %v375, 0.0
    %v422 = vrot.slane %v421, 4
    %v423 = vadd.f32 %v421, %v422
    %v424 = vrot.slane %v423, 2
    %v425 = vadd.f32 %v423, %v424
    %v426 = vrot.slane %v425, 1
    %v427 = vadd.f32 %v425, %v426
    %v428 = vsel %vm249, %v378, 0.0
    %v429 = vrot.slane %v428, 4
    %v430 = vadd.f32 %v428, %v429
    %v431 = vrot.slane %v430, 2
    %v432 = vadd.f32 %v430, %v431
    %v433 = vrot.slane %v432, 1
    %v434 = vadd.f32 %v432, %v433
    %v435 = vadd.f32 %v347, %v385
    %v436 = vadd.f32 %v348, %v392
    %v437 = vadd.f32 %v349, %v399
    %v438 = vadd.f32 %v350, %v406
    %v439 = vadd.f32 %v351, %v413
    %v440 = vadd.f32 %v352, %v420
    %v441 = vadd.f32 %v353, %v427
    %v442 = vadd.f32 %v354, %v434
    %443 = vst.msk [vmem:[#allocation3] sm:$0x1] %vm338, %v435
    %444 = vst.msk [vmem:[#allocation3 + $0x1] sm:$0x1] %vm338, %v436
    %445 = vst.msk [vmem:[#allocation3 + $0x2] sm:$0x1] %vm338, %v437
    %446 = vst.msk [vmem:[#allocation3 + $0x3] sm:$0x1] %vm338, %v438
    %447 = vst.msk [vmem:[#allocation3 + $0x4] sm:$0x1] %vm338, %v439
    %448 = vst.msk [vmem:[#allocation3 + $0x5] sm:$0x1] %vm338, %v440
    %449 = vst.msk [vmem:[#allocation3 + $0x6] sm:$0x1] %vm338, %v441
    %450 = vst.msk [vmem:[#allocation3 + $0x7] sm:$0x1] %vm338, %v442
    %v451 = vld [vmem:[#allocation4] sm:$0x1]
    %v452 = vld [vmem:[#allocation4 + $0x1] sm:$0x1]
    %v453 = vld [vmem:[#allocation4 + $0x2] sm:$0x1]
    %v454 = vld [vmem:[#allocation4 + $0x3] sm:$0x1]
    %v455 = vld [vmem:[#allocation4 + $0x4] sm:$0x1]
    %v456 = vld [vmem:[#allocation4 + $0x5] sm:$0x1]
    %v457 = vld [vmem:[#allocation4 + $0x6] sm:$0x1]
    %v458 = vld [vmem:[#allocation4 + $0x7] sm:$0x1]
    %v459 = vsel %vm249, %v217, 0.0
    %460 = vadd.xlane.f32.xlu0 %v459
    %v461 = vpop.xlane.xlu0 %460
    %v462 = vsel %vm249, %v218, 0.0
    %463 = vadd.xlane.f32.xlu0 %v462
    %v464 = vpop.xlane.xlu0 %463
    %v465 = vsel %vm249, %v219, 0.0
    %466 = vadd.xlane.f32.xlu0 %v465
    %v467 = vpop.xlane.xlu0 %466
    %v468 = vsel %vm249, %v220, 0.0
    %469 = vadd.xlane.f32.xlu0 %v468
    %v470 = vpop.xlane.xlu0 %469
    %v471 = vsel %vm249, %v221, 0.0
    %472 = vadd.xlane.f32.xlu0 %v471
    %v473 = vpop.xlane.xlu0 %472
    %v474 = vsel %vm249, %v222, 0.0
    %475 = vadd.xlane.f32.xlu0 %v474
    %v476 = vpop.xlane.xlu0 %475
    %v477 = vsel %vm249, %v223, 0.0
    %478 = vadd.xlane.f32.xlu0 %v477
    %v479 = vpop.xlane.xlu0 %478
    %v480 = vsel %vm249, %v224, 0.0
    %481 = vadd.xlane.f32.xlu0 %v480
    %v482 = vpop.xlane.xlu0 %481
    %v483 = vsel %vm249, %v461, 0.0
    %v484 = vrot.slane %v483, 4
    %v485 = vadd.f32 %v483, %v484
    %v486 = vrot.slane %v485, 2
    %v487 = vadd.f32 %v485, %v486
    %v488 = vrot.slane %v487, 1
    %v489 = vadd.f32 %v487, %v488
    %v490 = vsel %vm249, %v464, 0.0
    %v491 = vrot.slane %v490, 4
    %v492 = vadd.f32 %v490, %v491
    %v493 = vrot.slane %v492, 2
    %v494 = vadd.f32 %v492, %v493
    %v495 = vrot.slane %v494, 1
    %v496 = vadd.f32 %v494, %v495
    %v497 = vsel %vm249, %v467, 0.0
    %v498 = vrot.slane %v497, 4
    %v499 = vadd.f32 %v497, %v498
    %v500 = vrot.slane %v499, 2
    %v501 = vadd.f32 %v499, %v500
    %v502 = vrot.slane %v501, 1
    %v503 = vadd.f32 %v501, %v502
    %v504 = vsel %vm249, %v470, 0.0
    %v505 = vrot.slane %v504, 4
    %v506 = vadd.f32 %v504, %v505
    %v507 = vrot.slane %v506, 2
    %v508 = vadd.f32 %v506, %v507
    %v509 = vrot.slane %v508, 1
    %v510 = vadd.f32 %v508, %v509
    %v511 = vsel %vm249, %v473, 0.0
    %v512 = vrot.slane %v511, 4
    %v513 = vadd.f32 %v511, %v512
    %v514 = vrot.slane %v513, 2
    %v515 = vadd.f32 %v513, %v514
    %v516 = vrot.slane %v515, 1
    %v517 = vadd.f32 %v515, %v516
    %v518 = vsel %vm249, %v476, 0.0
    %v519 = vrot.slane %v518, 4
    %v520 = vadd.f32 %v518, %v519
    %v521 = vrot.slane %v520, 2
    %v522 = vadd.f32 %v520, %v521
    %v523 = vrot.slane %v522, 1
    %v524 = vadd.f32 %v522, %v523
    %v525 = vsel %vm249, %v479, 0.0
    %v526 = vrot.slane %v525, 4
    %v527 = vadd.f32 %v525, %v526
    %v528 = vrot.slane %v527, 2
    %v529 = vadd.f32 %v527, %v528
    %v530 = vrot.slane %v529, 1
    %v531 = vadd.f32 %v529, %v530
    %v532 = vsel %vm249, %v482, 0.0
    %v533 = vrot.slane %v532, 4
    %v534 = vadd.f32 %v532, %v533
    %v535 = vrot.slane %v534, 2
    %v536 = vadd.f32 %v534, %v535
    %v537 = vrot.slane %v536, 1
    %v538 = vadd.f32 %v536, %v537
    %v539 = vadd.f32 %v451, %v489
    %v540 = vadd.f32 %v452, %v496
    %v541 = vadd.f32 %v453, %v503
    %v542 = vadd.f32 %v454, %v510
    %v543 = vadd.f32 %v455, %v517
    %v544 = vadd.f32 %v456, %v524
    %v545 = vadd.f32 %v457, %v531
    %v546 = vadd.f32 %v458, %v538
    %547 = vst.msk [vmem:[#allocation4] sm:$0x1] %vm338, %v539
    %548 = vst.msk [vmem:[#allocation4 + $0x1] sm:$0x1] %vm338, %v540
    %549 = vst.msk [vmem:[#allocation4 + $0x2] sm:$0x1] %vm338, %v541
    %550 = vst.msk [vmem:[#allocation4 + $0x3] sm:$0x1] %vm338, %v542
    %551 = vst.msk [vmem:[#allocation4 + $0x4] sm:$0x1] %vm338, %v543
    %552 = vst.msk [vmem:[#allocation4 + $0x5] sm:$0x1] %vm338, %v544
    %553 = vst.msk [vmem:[#allocation4 + $0x6] sm:$0x1] %vm338, %v545
    %554 = vst.msk [vmem:[#allocation4 + $0x7] sm:$0x1] %vm338, %v546
    %v555 = vld [vmem:[#allocation5] sm:$0x1]
    %v556 = vld [vmem:[#allocation5 + $0x1] sm:$0x1]
    %v557 = vld [vmem:[#allocation5 + $0x2] sm:$0x1]
    %v558 = vld [vmem:[#allocation5 + $0x3] sm:$0x1]
    %v559 = vld [vmem:[#allocation5 + $0x4] sm:$0x1]
    %v560 = vld [vmem:[#allocation5 + $0x5] sm:$0x1]
    %v561 = vld [vmem:[#allocation5 + $0x6] sm:$0x1]
    %v562 = vld [vmem:[#allocation5 + $0x7] sm:$0x1]
    %v563 = vsel %vm249, %v233, 0.0
    %564 = vadd.xlane.f32.xlu0 %v563
    %v565 = vpop.xlane.xlu0 %564
    %v566 = vsel %vm249, %v234, 0.0
    %567 = vadd.xlane.f32.xlu0 %v566
    %v568 = vpop.xlane.xlu0 %567
    %v569 = vsel %vm249, %v235, 0.0
    %570 = vadd.xlane.f32.xlu0 %v569
    %v571 = vpop.xlane.xlu0 %570
    %v572 = vsel %vm249, %v236, 0.0
    %573 = vadd.xlane.f32.xlu0 %v572
    %v574 = vpop.xlane.xlu0 %573
    %v575 = vsel %vm249, %v237, 0.0
    %576 = vadd.xlane.f32.xlu0 %v575
    %v577 = vpop.xlane.xlu0 %576
    %v578 = vsel %vm249, %v238, 0.0
    %579 = vadd.xlane.f32.xlu0 %v578
    %v580 = vpop.xlane.xlu0 %579
    %v581 = vsel %vm249, %v239, 0.0
    %582 = vadd.xlane.f32.xlu0 %v581
    %v583 = vpop.xlane.xlu0 %582
    %v584 = vsel %vm249, %v240, 0.0
    %585 = vadd.xlane.f32.xlu0 %v584
    %v586 = vpop.xlane.xlu0 %585
    %v587 = vsel %vm249, %v565, 0.0
    %v588 = vrot.slane %v587, 4
    %v589 = vadd.f32 %v587, %v588
    %v590 = vrot.slane %v589, 2
    %v591 = vadd.f32 %v589, %v590
    %v592 = vrot.slane %v591, 1
    %v593 = vadd.f32 %v591, %v592
    %v594 = vsel %vm249, %v568, 0.0
    %v595 = vrot.slane %v594, 4
    %v596 = vadd.f32 %v594, %v595
    %v597 = vrot.slane %v596, 2
    %v598 = vadd.f32 %v596, %v597
    %v599 = vrot.slane %v598, 1
    %v600 = vadd.f32 %v598, %v599
    %v601 = vsel %vm249, %v571, 0.0
    %v602 = vrot.slane %v601, 4
    %v603 = vadd.f32 %v601, %v602
    %v604 = vrot.slane %v603, 2
    %v605 = vadd.f32 %v603, %v604
    %v606 = vrot.slane %v605, 1
    %v607 = vadd.f32 %v605, %v606
    %v608 = vsel %vm249, %v574, 0.0
    %v609 = vrot.slane %v608, 4
    %v610 = vadd.f32 %v608, %v609
    %v611 = vrot.slane %v610, 2
    %v612 = vadd.f32 %v610, %v611
    %v613 = vrot.slane %v612, 1
    %v614 = vadd.f32 %v612, %v613
    %v615 = vsel %vm249, %v577, 0.0
    %v616 = vrot.slane %v615, 4
    %v617 = vadd.f32 %v615, %v616
    %v618 = vrot.slane %v617, 2
    %v619 = vadd.f32 %v617, %v618
    %v620 = vrot.slane %v619, 1
    %v621 = vadd.f32 %v619, %v620
    %v622 = vsel %vm249, %v580, 0.0
    %v623 = vrot.slane %v622, 4
    %v624 = vadd.f32 %v622, %v623
    %v625 = vrot.slane %v624, 2
    %v626 = vadd.f32 %v624, %v625
    %v627 = vrot.slane %v626, 1
    %v628 = vadd.f32 %v626, %v627
    %v629 = vsel %vm249, %v583, 0.0
    %v630 = vrot.slane %v629, 4
    %v631 = vadd.f32 %v629, %v630
    %v632 = vrot.slane %v631, 2
    %v633 = vadd.f32 %v631, %v632
    %v634 = vrot.slane %v633, 1
    %v635 = vadd.f32 %v633, %v634
    %v636 = vsel %vm249, %v586, 0.0
    %v637 = vrot.slane %v636, 4
    %v638 = vadd.f32 %v636, %v637
    %v639 = vrot.slane %v638, 2
    %v640 = vadd.f32 %v638, %v639
    %v641 = vrot.slane %v640, 1
    %v642 = vadd.f32 %v640, %v641
    %v643 = vadd.f32 %v555, %v593
    %v644 = vadd.f32 %v556, %v600
    %v645 = vadd.f32 %v557, %v607
    %v646 = vadd.f32 %v558, %v614
    %v647 = vadd.f32 %v559, %v621
    %v648 = vadd.f32 %v560, %v628
    %v649 = vadd.f32 %v561, %v635
    %v650 = vadd.f32 %v562, %v642
    %651 = vst.msk [vmem:[#allocation5] sm:$0x1] %vm338, %v643
    %652 = vst.msk [vmem:[#allocation5 + $0x1] sm:$0x1] %vm338, %v644
    %653 = vst.msk [vmem:[#allocation5 + $0x2] sm:$0x1] %vm338, %v645
    %654 = vst.msk [vmem:[#allocation5 + $0x3] sm:$0x1] %vm338, %v646
    %655 = vst.msk [vmem:[#allocation5 + $0x4] sm:$0x1] %vm338, %v647
    %656 = vst.msk [vmem:[#allocation5 + $0x5] sm:$0x1] %vm338, %v648
    %657 = vst.msk [vmem:[#allocation5 + $0x6] sm:$0x1] %vm338, %v649
    %658 = vst.msk [vmem:[#allocation5 + $0x7] sm:$0x1] %vm338, %v650
    %v659 = vld [vmem:[#allocation6] sm:$0x1]
    %v660 = vld [vmem:[#allocation6 + $0x1] sm:$0x1]
    %v661 = vmul.f32 %v170, %v90
    %v662 = vmul.f32 %v174, %v94
    %v663 = vsel %vm249, %v661, 0.0
    %664 = vadd.xlane.f32.xlu0 %v663
    %v665 = vpop.xlane.xlu0 %664
    %v666 = vsel %vm249, %v662, 0.0
    %667 = vadd.xlane.f32.xlu0 %v666
    %v668 = vpop.xlane.xlu0 %667
    %v669 = vsel %vm249, %v665, 0.0
    %v670 = vrot.slane %v669, 4
    %v671 = vadd.f32 %v669, %v670
    %v672 = vrot.slane %v671, 2
    %v673 = vadd.f32 %v671, %v672
    %v674 = vrot.slane %v673, 1
    %v675 = vadd.f32 %v673, %v674
    %v676 = vsel %vm249, %v668, 0.0
    %v677 = vrot.slane %v676, 4
    %v678 = vadd.f32 %v676, %v677
    %v679 = vrot.slane %v678, 2
    %v680 = vadd.f32 %v678, %v679
    %v681 = vrot.slane %v680, 1
    %v682 = vadd.f32 %v680, %v681
    %v683 = vadd.f32 %v659, %v675
    %v684 = vadd.f32 %v660, %v682
    %685 = vst.msk [vmem:[#allocation6] sm:$0x1] %vm338, %v683
    %686 = vst.msk [vmem:[#allocation6 + $0x1] sm:$0x1] %vm338, %v684
    %v687 = vld [vmem:[#allocation7] sm:$0x1]
    %v688 = vld [vmem:[#allocation7 + $0x1] sm:$0x1]
    %v689 = vmul.f32 %v171, %v91
    %v690 = vmul.f32 %v175, %v95
    %v691 = vsel %vm249, %v689, 0.0
    %692 = vadd.xlane.f32.xlu0 %v691
    %v693 = vpop.xlane.xlu0 %692
    %v694 = vsel %vm249, %v690, 0.0
    %695 = vadd.xlane.f32.xlu0 %v694
    %v696 = vpop.xlane.xlu0 %695
    %v697 = vsel %vm249, %v693, 0.0
    %v698 = vrot.slane %v697, 4
    %v699 = vadd.f32 %v697, %v698
    %v700 = vrot.slane %v699, 2
    %v701 = vadd.f32 %v699, %v700
    %v702 = vrot.slane %v701, 1
    %v703 = vadd.f32 %v701, %v702
    %v704 = vsel %vm249, %v696, 0.0
    %v705 = vrot.slane %v704, 4
    %v706 = vadd.f32 %v704, %v705
    %v707 = vrot.slane %v706, 2
    %v708 = vadd.f32 %v706, %v707
    %v709 = vrot.slane %v708, 1
    %v710 = vadd.f32 %v708, %v709
    %v711 = vadd.f32 %v687, %v703
    %v712 = vadd.f32 %v688, %v710
    %713 = vst.msk [vmem:[#allocation7] sm:$0x1] %vm338, %v711
    %714 = vst.msk [vmem:[#allocation7 + $0x1] sm:$0x1] %vm338, %v712
    // Predicated region
    $region22: #{tpu_custom_call.1} parent=1 // pred_check
      %p715 = pneg %p40
    $region23: #{tpu_custom_call.1} parent=1 // pred_check_branch
      %717 = sbr.rel (%p715) target = $region25
    $region24: #{tpu_custom_call.1} parent=1 // pred_region
      %v718 = vld [vmem:[#allocation2] sm:$0x1]
      %v719 = vld [vmem:[#allocation2 + $0x1] sm:$0x1]
      %v720 = vld [vmem:[#allocation2 + $0x2] sm:$0x1]
      %v721 = vld [vmem:[#allocation2 + $0x3] sm:$0x1]
      %v722 = vld [vmem:[#allocation2 + $0x4] sm:$0x1]
      %v723 = vld [vmem:[#allocation2 + $0x5] sm:$0x1]
      %v724 = vld [vmem:[#allocation2 + $0x6] sm:$0x1]
      %v725 = vld [vmem:[#allocation2 + $0x7] sm:$0x1]
      %v726 = vld [vmem:[#allocation3] sm:$0x1]
      %v727 = vld [vmem:[#allocation3 + $0x1] sm:$0x1]
      %v728 = vld [vmem:[#allocation3 + $0x2] sm:$0x1]
      %v729 = vld [vmem:[#allocation3 + $0x3] sm:$0x1]
      %v730 = vld [vmem:[#allocation3 + $0x4] sm:$0x1]
      %v731 = vld [vmem:[#allocation3 + $0x5] sm:$0x1]
      %v732 = vld [vmem:[#allocation3 + $0x6] sm:$0x1]
      %v733 = vld [vmem:[#allocation3 + $0x7] sm:$0x1]
      %v734 = vld [vmem:[#allocation6] sm:$0x1]
      %v735 = vld [vmem:[#allocation6 + $0x1] sm:$0x1]
      %v736 = vld [vmem:[#allocation7] sm:$0x1]
      %v737 = vld [vmem:[#allocation7 + $0x1] sm:$0x1]
      %v738 = vmul.f32 %v734, 2.0
      %v739 = vmul.f32 %v735, 2.0
      %v740 = vadd.f32 %v738, 1e-05
      %v741 = vadd.f32 %v739, 1e-05
      %v742 = vadd.f32 %v719, %v727
      %v743 = vadd.f32 %v723, %v731
      %v744 = vadd.f32 %v742, 1e-05
      %v745 = vadd.f32 %v743, 1e-05
      %v746 = vrcp.pop %v744
      %v747 = vmul.f32 %v740, %v746
      %v748 = vrcp.pop %v745
      %v749 = vmul.f32 %v741, %v748
      %v750 = vmul.f32 %v736, 2.0
      %v751 = vmul.f32 %v737, 2.0
      %v752 = vadd.f32 %v750, 1e-05
      %v753 = vadd.f32 %v751, 1e-05
      %v754 = vadd.f32 %v720, %v728
      %v755 = vadd.f32 %v724, %v732
      %v756 = vadd.f32 %v754, 1e-05
      %v757 = vadd.f32 %v755, 1e-05
      %v758 = vrcp.pop %v756
      %v759 = vmul.f32 %v752, %v758
      %v760 = vrcp.pop %v757
      %v761 = vmul.f32 %v753, %v760
      %v762 = vld [vmem:[#allocation4] sm:$0x1]
      %v763 = vld [vmem:[#allocation4 + $0x1] sm:$0x1]
      %v764 = vld [vmem:[#allocation4 + $0x2] sm:$0x1]
      %v765 = vld [vmem:[#allocation4 + $0x3] sm:$0x1]
      %v766 = vld [vmem:[#allocation4 + $0x4] sm:$0x1]
      %v767 = vld [vmem:[#allocation4 + $0x5] sm:$0x1]
      %v768 = vld [vmem:[#allocation4 + $0x6] sm:$0x1]
      %v769 = vld [vmem:[#allocation4 + $0x7] sm:$0x1]
      %v770 = vsel %vm338, %v762, 0.0
      %v771 = vsel %vm338, %v766, 0.0
      %v772 = vadd.f32 %v770, %v771
      %v773 = vsel %vm338, %v763, 0.0
      %v774 = vsel %vm338, %v767, 0.0
      %v775 = vadd.f32 %v773, %v774
      %v776 = vsel %vm338, %v764, 0.0
      %v777 = vsel %vm338, %v768, 0.0
      %v778 = vadd.f32 %v776, %v777
      %v779 = vsel %vm338, %v765, 0.0
      %v780 = vsel %vm338, %v769, 0.0
      %v781 = vadd.f32 %v779, %v780
      %v782 = vsel %vm338, %v772, 0.0
      %v783 = vsel %vm338, %v775, 0.0
      %v784 = vadd.f32 %v782, %v783
      %v785 = vsel %vm338, %v778, 0.0
      %v786 = vadd.f32 %v784, %v785
      %v787 = vsel %vm338, %v781, 0.0
      %v788 = vadd.f32 %v786, %v787
      %v789 = vld [vmem:[#allocation5] sm:$0x1]
      %v790 = vld [vmem:[#allocation5 + $0x1] sm:$0x1]
      %v791 = vld [vmem:[#allocation5 + $0x2] sm:$0x1]
      %v792 = vld [vmem:[#allocation5 + $0x3] sm:$0x1]
      %v793 = vld [vmem:[#allocation5 + $0x4] sm:$0x1]
      %v794 = vld [vmem:[#allocation5 + $0x5] sm:$0x1]
      %v795 = vld [vmem:[#allocation5 + $0x6] sm:$0x1]
      %v796 = vld [vmem:[#allocation5 + $0x7] sm:$0x1]
      %v797 = vsel %vm338, %v789, 0.0
      %v798 = vsel %vm338, %v793, 0.0
      %v799 = vadd.f32 %v797, %v798
      %v800 = vsel %vm338, %v790, 0.0
      %v801 = vsel %vm338, %v794, 0.0
      %v802 = vadd.f32 %v800, %v801
      %v803 = vsel %vm338, %v791, 0.0
      %v804 = vsel %vm338, %v795, 0.0
      %v805 = vadd.f32 %v803, %v804
      %v806 = vsel %vm338, %v792, 0.0
      %v807 = vsel %vm338, %v796, 0.0
      %v808 = vadd.f32 %v806, %v807
      %v809 = vsel %vm338, %v799, 0.0
      %v810 = vsel %vm338, %v802, 0.0
      %v811 = vadd.f32 %v809, %v810
      %v812 = vsel %vm338, %v805, 0.0
      %v813 = vadd.f32 %v811, %v812
      %v814 = vsel %vm338, %v808, 0.0
      %v815 = vadd.f32 %v813, %v814
      %v816 = vsel %vm338, %v718, 0.0
      %v817 = vsel %vm338, %v722, 0.0
      %v818 = vadd.f32 %v816, %v817
      %v819 = vsel %vm338, %v719, 0.0
      %v820 = vsel %vm338, %v723, 0.0
      %v821 = vadd.f32 %v819, %v820
      %v822 = vsel %vm338, %v720, 0.0
      %v823 = vsel %vm338, %v724, 0.0
      %v824 = vadd.f32 %v822, %v823
      %v825 = vsel %vm338, %v721, 0.0
      %v826 = vsel %vm338, %v725, 0.0
      %v827 = vadd.f32 %v825, %v826
      %v828 = vsel %vm338, %v818, 0.0
      %v829 = vsel %vm338, %v821, 0.0
      %v830 = vadd.f32 %v828, %v829
      %v831 = vsel %vm338, %v824, 0.0
      %v832 = vadd.f32 %v830, %v831
      %v833 = vsel %vm338, %v827, 0.0
      %v834 = vadd.f32 %v832, %v833
      %v835 = vsel %vm338, %v726, 0.0
      %v836 = vsel %vm338, %v730, 0.0
      %v837 = vadd.f32 %v835, %v836
      %v838 = vsel %vm338, %v727, 0.0
      %v839 = vsel %vm338, %v731, 0.0
      %v840 = vadd.f32 %v838, %v839
      %v841 = vsel %vm338, %v728, 0.0
      %v842 = vsel %vm338, %v732, 0.0
      %v843 = vadd.f32 %v841, %v842
      %v844 = vsel %vm338, %v729, 0.0
      %v845 = vsel %vm338, %v733, 0.0
      %v846 = vadd.f32 %v844, %v845
      %v847 = vsel %vm338, %v837, 0.0
      %v848 = vsel %vm338, %v840, 0.0
      %v849 = vadd.f32 %v847, %v848
      %v850 = vsel %vm338, %v843, 0.0
      %v851 = vadd.f32 %v849, %v850
      %v852 = vsel %vm338, %v846, 0.0
      %v853 = vadd.f32 %v851, %v852
      %v854 = vsel %vm338, %v747, 0.0
      %v855 = vsel %vm338, %v749, 0.0
      %v856 = vadd.f32 %v854, %v855
      %v857 = vsel %vm338, %v759, 0.0
      %v858 = vsel %vm338, %v761, 0.0
      %v859 = vadd.f32 %v857, %v858
      %v860 = vlaneseq
      %v861 = vand.u32 %v860, 127
      %vm862 = vcmp.eq.s32.totalorder %v861, 0
      %v863 = vsel %vm862, 1.0, 0.0
      %s865 = vtos %v788
      %v866 = vstv %s865
      %v868 = vmul.f32 %v863, %v866
      %vm869 = vcmp.eq.s32.totalorder %v861, 1
      %v870 = vsel %vm869, 1.0, 0.0
      %s872 = vtos %v815
      %v873 = vstv %s872
      %v875 = vmul.f32 %v870, %v873
      %v876 = vadd.f32 %v868, %v875
      %vm877 = vcmp.eq.s32.totalorder %v861, 2
      %v878 = vsel %vm877, 1.0, 0.0
      %s880 = vtos %v834
      %v881 = vstv %s880
      %v883 = vmul.f32 %v878, %v881
      %v884 = vadd.f32 %v876, %v883
      %vm885 = vcmp.eq.s32.totalorder %v861, 3
      %v886 = vsel %vm885, 1.0, 0.0
      %s888 = vtos %v853
      %v889 = vstv %s888
      %v891 = vmul.f32 %v886, %v889
      %v892 = vadd.f32 %v884, %v891
      %vm893 = vcmp.eq.s32.totalorder %v861, 4
      %v894 = vsel %vm893, 1.0, 0.0
      %s896 = vtos %v856
      %v897 = vstv %s896
      %v899 = vmul.f32 %v894, %v897
      %v900 = vadd.f32 %v892, %v899
      %vm901 = vcmp.eq.s32.totalorder %v861, 5
      %v902 = vsel %vm901, 1.0, 0.0
      %s904 = vtos %v859
      %v905 = vstv %s904
      %v907 = vmul.f32 %v902, %v905
      %v908 = vadd.f32 %v900, %v907
      %909 = vst [vmem:[#allocation13] sm:$0xff] %v908
    $region25: #{tpu_custom_call.1} parent=1 // pred_fallthru
      _
    // Predicated region
    $region26: #{tpu_custom_call.1} parent=1 // pred_check
      _
    $region27: #{tpu_custom_call.1} parent=1 // pred_check_branch
      %911 = sbr.rel (0) target = $region29
    $region28: #{tpu_custom_call.1} parent=1 // pred_region
      %s913 = ssub.s32 128, 128
      %914 = vsyncadd [#allocation10], %s913
      %s916 = sshll.u32 [#allocation13], 4
      %s917 = int_to_ptr.vmem [resolvable:$true] %s916
      %919 = dma.vmem_to_hbm [thread:$0]  %s917, 128, %s2, [#allocation10]
    $region29: #{tpu_custom_call.1} parent=1 // pred_fallthru
      _
    // Predicated region
    $region30: #{tpu_custom_call.1} parent=1 // pred_check
      _
    $region31: #{tpu_custom_call.1} parent=1 // pred_check_branch
      %921 = sbr.rel (0) target = $region33
    $region32: #{tpu_custom_call.1} parent=1 // pred_region
      %922 = dma.done [#allocation10], 128
    $region33: #{tpu_custom_call.1} parent=1 // pred_fallthru
      _
    %923 = vsyncpa [#allocation9], 1
    %924 = vsyncpa [#allocation12], 1
    %925 = vsyncpa [#allocation10], 1

</llo_original>
